<compile_context>
chip_gen: v5e
topology: v5e:2x2
jax: 0.10.0
libtpu: 0.0.40
codegen_flags: <defaults>
</compile_context>

<pallas_src>
import jax
import jax.numpy as jnp
from jax.experimental import pallas as pl
from jax.experimental.pallas import tpu as pltpu

NUM_CIRCLES = 20                       # j loop
NUM_ANGLES = 18                        # k in range(0, 360, 20)
NUM_PTS = NUM_CIRCLES * NUM_ANGLES     # 360 generated points per batch element
LANES = 128                            # lane chunk of target points
PI = 3.1415926                         # exact constant used by the torch code


def _chamfer_kernel(pts_ref, tgt_ref, out_ref, pbro_ref, minsq_ref):
    # pts_ref  : (1, 360, 3)    generated points for this batch element
    # tgt_ref  : (1, 3, Np)     target points, channel-major, Np % 128 == 0
    # out_ref  : (1, 1, 1)      per-batch-element loss
    # pbro_ref : (3, 360, 128)  VMEM scratch: lane-broadcast generated coords
    # minsq_ref: (360, 128)     VMEM scratch: running per-lane min squared dist
    npts = tgt_ref.shape[2]
    num_chunks = npts // LANES

    # Hoist the lane broadcasts of the generated-point coordinates out of the
    # chunk loop (JAX does not CSE broadcast_in_dim inside loops).
    pts = pts_ref[0]                                               # (360, 3)
    pbro_ref[0] = jnp.broadcast_to(pts[:, 0:1], (NUM_PTS, LANES))
    pbro_ref[1] = jnp.broadcast_to(pts[:, 1:2], (NUM_PTS, LANES))
    pbro_ref[2] = jnp.broadcast_to(pts[:, 2:3], (NUM_PTS, LANES))

    minsq_ref[...] = jnp.full((NUM_PTS, LANES),
                              jnp.finfo(jnp.float32).max, dtype=jnp.float32)

    def process_chunk(start):
        # One 128-lane block of target points; channel rows are lane-dense.
        tx = tgt_ref[0, 0:1, pl.ds(start, LANES)]                  # (1, 128)
        ty = tgt_ref[0, 1:2, pl.ds(start, LANES)]
        tz = tgt_ref[0, 2:3, pl.ds(start, LANES)]
        dx = pbro_ref[0] - tx                                      # (360, 128)
        dy = pbro_ref[1] - ty
        dz = pbro_ref[2] - tz
        d2 = dx * dx + dy * dy + dz * dz                           # VPU only
        minsq_ref[...] = jnp.minimum(minsq_ref[...], d2)           # deferred reduce

    if num_chunks <= 8:
        for c in range(num_chunks):                                # static unroll
            process_chunk(c * LANES)
    else:
        def body(c, carry):
            process_chunk(pl.multiple_of(c * LANES, LANES))
            return carry
        jax.lax.fori_loop(0, num_chunks, body, 0)

    # Single cross-lane min per batch element; sqrt only on the reduced vector.
    d2min = jnp.min(minsq_ref[...], axis=1, keepdims=True)         # (360, 1)
    out_ref[0] = jnp.sum(jnp.sqrt(d2min), axis=0, keepdims=True)   # (1, 1)


def get_loss_pallas(pred, target, trans_feat=None):
    # trans_feat is unused by the reference forward.
    del trans_feat
    B = pred.shape[0]
    N = target.shape[1]

    radii = pred.reshape(B, NUM_CIRCLES).astype(jnp.float32)        # (B, 20)

    # Generated points (tiny B*360*3 computation, done once in the wrapper).
    angles = jnp.arange(NUM_ANGLES, dtype=jnp.float32) * (20.0 * 2.0 * PI / 360.0)
    cos_a = jnp.cos(angles)                                         # (18,)
    sin_a = jnp.sin(angles)                                         # (18,)
    cy = 0.075 * jnp.arange(NUM_CIRCLES, dtype=jnp.float32) - 0.7   # (20,)

    px = 0.04 - radii[:, :, None] * cos_a[None, None, :]            # (B, 20, 18)
    py = jnp.broadcast_to(cy[None, :, None], px.shape)              # (B, 20, 18)
    pz = radii[:, :, None] * sin_a[None, None, :]                   # (B, 20, 18)
    pts = jnp.stack([px, py, pz], axis=-1).reshape(B, NUM_PTS, 3)   # (B, 360, 3)

    # Channel-major, lane-dense target; pad N to a lane multiple by repeating
    # the last point (duplicates do not change the min).
    target_cm = jnp.transpose(target.astype(jnp.float32), (0, 2, 1))  # (B, 3, N)
    n_pad = ((N + LANES - 1) // LANES) * LANES
    if n_pad != N:
        target_cm = jnp.pad(target_cm, ((0, 0), (0, 0), (0, n_pad - N)),
                            mode="edge")

    cost = pl.CostEstimate(
        flops=int(8 * B * NUM_PTS * n_pad),
        transcendentals=int(B * NUM_PTS),
        bytes_accessed=int(4 * (B * 3 * n_pad + B * NUM_PTS * 3 + B)),
    )

    out = pl.pallas_call(
        _chamfer_kernel,
        out_shape=jax.ShapeDtypeStruct((B, 1, 1), jnp.float32),
        grid=(B,),
        in_specs=[
            pl.BlockSpec((1, NUM_PTS, 3), lambda i: (i, 0, 0)),
            pl.BlockSpec((1, 3, n_pad), lambda i: (i, 0, 0)),
        ],
        out_specs=pl.BlockSpec((1, 1, 1), lambda i: (i, 0, 0)),
        scratch_shapes=[
            pltpu.VMEM((3, NUM_PTS, LANES), jnp.float32),
            pltpu.VMEM((NUM_PTS, LANES), jnp.float32),
        ],
        compiler_params=pltpu.CompilerParams(
            dimension_semantics=("parallel",)),   # one batch element per step
        cost_estimate=cost,
    )(pts, target_cm)

    # TODO(synk): for extremely large point clouds (N >> 1M) add an N-chunk
    # grid axis instead of keeping the whole (1,3,N) block resident in VMEM.
    return jnp.sum(out)


def get_loss_reference(pred, target):
    # Pure-JAX reference of the same math, for a correctness check.
    B = pred.shape[0]
    r = pred.reshape(B, NUM_CIRCLES).astype(jnp.float32)
    j = jnp.arange(NUM_CIRCLES, dtype=jnp.float32)
    k = jnp.arange(0, 360, 20).astype(jnp.float32)
    a = k * 2.0 * PI / 360.0
    px = 0.04 - r[:, :, None] * jnp.cos(a)[None, None, :]
    py = jnp.broadcast_to((0.075 * j - 0.7)[None, :, None], px.shape)
    pz = r[:, :, None] * jnp.sin(a)[None, None, :]
    pts = jnp.stack([px, py, pz], axis=-1).reshape(B, NUM_PTS, 3)
    d = jnp.sqrt(jnp.sum((pts[:, :, None, :] - target[:, None, :, :]) ** 2, axis=-1))
    return jnp.sum(jnp.min(d, axis=-1))


if __name__ == "__main__":
    key = jax.random.PRNGKey(0)
    k1, k2 = jax.random.split(key)

    B, N = 2, 128
    # pred: (B, 20) predicted radii; target: (B, N, 3) point cloud.
    pred = 0.1 * jax.random.uniform(k1, (B, NUM_CIRCLES), dtype=jnp.float32) + 0.02
    target = jax.random.normal(k2, (B, N, 3), dtype=jnp.float32) * 0.5

    loss = get_loss_pallas(pred, target, trans_feat=None)
    loss = jax.block_until_ready(loss)

    ref = jax.block_until_ready(get_loss_reference(pred, target))
    assert jnp.allclose(loss, ref, rtol=1e-3, atol=1e-3), (loss, ref)

    print("KERNEL_OK")
</pallas_src>

<mosaic_0001>
module attributes {stable_mosaic.version = 11 : i64} {
  func.func @_chamfer_kernel(%arg0: i32, %arg1: memref<1x360x3xf32, #tpu.memory_space<vmem>>, %arg2: memref<1x3x128xf32, #tpu.memory_space<vmem>>, %arg3: memref<1x1x1xf32, #tpu.memory_space<vmem>>, %arg4: memref<3x360x128xf32, #tpu.memory_space<vmem>>, %arg5: memref<360x128xf32, #tpu.memory_space<vmem>>) attributes {dimension_semantics = [#tpu.dimension_semantics<parallel>], iteration_bounds = array<i64: 2>, scalar_prefetch = 0 : i64, scratch_operands = 2 : i64, tpu.core_type = #tpu.core_type<tc>, window_params = [{transform_indices = @transform_0, window_bounds = array<i64: 1, 360, 3>}, {transform_indices = @transform_1, window_bounds = array<i64: 1, 3, 128>}, {transform_indices = @transform_2, window_bounds = array<i64: 1, 1, 1>}]} {
    %c0 = arith.constant 0 : index
    %c0_0 = arith.constant 0 : index
    %c0_1 = arith.constant 0 : index
    %0 = vector.load %arg1[%c0, %c0_0, %c0_1] : memref<1x360x3xf32, #tpu.memory_space<vmem>>, vector<1x360x3xf32>
    %1 = vector.shape_cast %0 : vector<1x360x3xf32> to vector<360x3xf32>
    %2 = vector.extract_strided_slice %1 {offsets = [0, 0], sizes = [360, 1], strides = [1, 1]} : vector<360x3xf32> to vector<360x1xf32>
    %3 = vector.shape_cast %2 : vector<360x1xf32> to vector<360x1xf32>
    %4 = vector.broadcast %3 : vector<360x1xf32> to vector<360x128xf32>
    %c0_2 = arith.constant 0 : index
    %c0_3 = arith.constant 0 : index
    %c0_4 = arith.constant 0 : index
    %5 = vector.load %arg4[%c0_2, %c0_3, %c0_4] : memref<3x360x128xf32, #tpu.memory_space<vmem>>, vector<1x360x128xf32>
    %6 = vector.shape_cast %5 : vector<1x360x128xf32> to vector<360x128xf32>
    %7 = vector.shape_cast %4 : vector<360x128xf32> to vector<1x360x128xf32>
    tpu.vector_store %arg4[%c0_2, %c0_3, %c0_4], %7 {strides = array<i32>} : memref<3x360x128xf32, #tpu.memory_space<vmem>>, vector<1x360x128xf32>,
    %8 = vector.extract_strided_slice %1 {offsets = [0, 1], sizes = [360, 1], strides = [1, 1]} : vector<360x3xf32> to vector<360x1xf32>
    %9 = vector.shape_cast %8 : vector<360x1xf32> to vector<360x1xf32>
    %10 = vector.broadcast %9 : vector<360x1xf32> to vector<360x128xf32>
    %c1 = arith.constant 1 : index
    %c0_5 = arith.constant 0 : index
    %c0_6 = arith.constant 0 : index
    %11 = vector.load %arg4[%c1, %c0_5, %c0_6] : memref<3x360x128xf32, #tpu.memory_space<vmem>>, vector<1x360x128xf32>
    %12 = vector.shape_cast %11 : vector<1x360x128xf32> to vector<360x128xf32>
    %13 = vector.shape_cast %10 : vector<360x128xf32> to vector<1x360x128xf32>
    tpu.vector_store %arg4[%c1, %c0_5, %c0_6], %13 {strides = array<i32>} : memref<3x360x128xf32, #tpu.memory_space<vmem>>, vector<1x360x128xf32>,
    %14 = vector.extract_strided_slice %1 {offsets = [0, 2], sizes = [360, 1], strides = [1, 1]} : vector<360x3xf32> to vector<360x1xf32>
    %15 = vector.shape_cast %14 : vector<360x1xf32> to vector<360x1xf32>
    %16 = vector.broadcast %15 : vector<360x1xf32> to vector<360x128xf32>
    %c2 = arith.constant 2 : index
    %c0_7 = arith.constant 0 : index
    %c0_8 = arith.constant 0 : index
    %17 = vector.load %arg4[%c2, %c0_7, %c0_8] : memref<3x360x128xf32, #tpu.memory_space<vmem>>, vector<1x360x128xf32>
    %18 = vector.shape_cast %17 : vector<1x360x128xf32> to vector<360x128xf32>
    %19 = vector.shape_cast %16 : vector<360x128xf32> to vector<1x360x128xf32>
    tpu.vector_store %arg4[%c2, %c0_7, %c0_8], %19 {strides = array<i32>} : memref<3x360x128xf32, #tpu.memory_space<vmem>>, vector<1x360x128xf32>,
    %cst = arith.constant 3.40282347E+38 : f32
    %20 = vector.broadcast %cst : f32 to vector<360x128xf32>
    %c0_9 = arith.constant 0 : index
    %c0_10 = arith.constant 0 : index
    %21 = vector.load %arg5[%c0_9, %c0_10] : memref<360x128xf32, #tpu.memory_space<vmem>>, vector<360x128xf32>
    tpu.vector_store %arg5[%c0_9, %c0_10], %20 {strides = array<i32>} : memref<360x128xf32, #tpu.memory_space<vmem>>, vector<360x128xf32>,
    %c0_11 = arith.constant 0 : index
    %c0_12 = arith.constant 0 : index
    %c0_13 = arith.constant 0 : index
    %22 = vector.load %arg2[%c0_11, %c0_12, %c0_13] : memref<1x3x128xf32, #tpu.memory_space<vmem>>, vector<1x1x128xf32>
    %23 = vector.shape_cast %22 : vector<1x1x128xf32> to vector<1x128xf32>
    %c0_14 = arith.constant 0 : index
    %c1_15 = arith.constant 1 : index
    %c0_16 = arith.constant 0 : index
    %24 = vector.load %arg2[%c0_14, %c1_15, %c0_16] : memref<1x3x128xf32, #tpu.memory_space<vmem>>, vector<1x1x128xf32>
    %25 = vector.shape_cast %24 : vector<1x1x128xf32> to vector<1x128xf32>
    %c0_17 = arith.constant 0 : index
    %c2_18 = arith.constant 2 : index
    %c0_19 = arith.constant 0 : index
    %26 = vector.load %arg2[%c0_17, %c2_18, %c0_19] : memref<1x3x128xf32, #tpu.memory_space<vmem>>, vector<1x1x128xf32>
    %27 = vector.shape_cast %26 : vector<1x1x128xf32> to vector<1x128xf32>
    %c0_20 = arith.constant 0 : index
    %c0_21 = arith.constant 0 : index
    %c0_22 = arith.constant 0 : index
    %28 = vector.load %arg4[%c0_20, %c0_21, %c0_22] : memref<3x360x128xf32, #tpu.memory_space<vmem>>, vector<1x360x128xf32>
    %29 = vector.shape_cast %28 : vector<1x360x128xf32> to vector<360x128xf32>
    %30 = vector.broadcast %23 : vector<1x128xf32> to vector<360x128xf32>
    %31 = arith.subf %29, %30 : vector<360x128xf32>
    %c1_23 = arith.constant 1 : index
    %c0_24 = arith.constant 0 : index
    %c0_25 = arith.constant 0 : index
    %32 = vector.load %arg4[%c1_23, %c0_24, %c0_25] : memref<3x360x128xf32, #tpu.memory_space<vmem>>, vector<1x360x128xf32>
    %33 = vector.shape_cast %32 : vector<1x360x128xf32> to vector<360x128xf32>
    %34 = vector.broadcast %25 : vector<1x128xf32> to vector<360x128xf32>
    %35 = arith.subf %33, %34 : vector<360x128xf32>
    %c2_26 = arith.constant 2 : index
    %c0_27 = arith.constant 0 : index
    %c0_28 = arith.constant 0 : index
    %36 = vector.load %arg4[%c2_26, %c0_27, %c0_28] : memref<3x360x128xf32, #tpu.memory_space<vmem>>, vector<1x360x128xf32>
    %37 = vector.shape_cast %36 : vector<1x360x128xf32> to vector<360x128xf32>
    %38 = vector.broadcast %27 : vector<1x128xf32> to vector<360x128xf32>
    %39 = arith.subf %37, %38 : vector<360x128xf32>
    %40 = arith.mulf %31, %31 : vector<360x128xf32>
    %41 = arith.mulf %35, %35 : vector<360x128xf32>
    %42 = arith.addf %40, %41 : vector<360x128xf32>
    %43 = arith.mulf %39, %39 : vector<360x128xf32>
    %44 = arith.addf %42, %43 : vector<360x128xf32>
    %c0_29 = arith.constant 0 : index
    %c0_30 = arith.constant 0 : index
    %45 = vector.load %arg5[%c0_29, %c0_30] : memref<360x128xf32, #tpu.memory_space<vmem>>, vector<360x128xf32>
    %46 = arith.minimumf %45, %44 : vector<360x128xf32>
    %c0_31 = arith.constant 0 : index
    %c0_32 = arith.constant 0 : index
    %47 = vector.load %arg5[%c0_31, %c0_32] : memref<360x128xf32, #tpu.memory_space<vmem>>, vector<360x128xf32>
    tpu.vector_store %arg5[%c0_31, %c0_32], %46 {strides = array<i32>} : memref<360x128xf32, #tpu.memory_space<vmem>>, vector<360x128xf32>,
    %c0_33 = arith.constant 0 : index
    %c0_34 = arith.constant 0 : index
    %48 = vector.load %arg5[%c0_33, %c0_34] : memref<360x128xf32, #tpu.memory_space<vmem>>, vector<360x128xf32>
    %cst_35 = arith.constant dense<0x7F800000> : vector<360xf32>
    %49 = vector.multi_reduction <minimumf>, %48, %cst_35 [1] : vector<360x128xf32> to vector<360xf32>
    %50 = vector.shape_cast %49 : vector<360xf32> to vector<360x1xf32>
    %51 = math.sqrt %50 : vector<360x1xf32>
    %cst_36 = arith.constant dense<0.000000e+00> : vector<1xf32>
    %52 = vector.multi_reduction <add>, %51, %cst_36 [0] : vector<360x1xf32> to vector<1xf32>
    %53 = vector.shape_cast %52 : vector<1xf32> to vector<1x1xf32>
    %c0_37 = arith.constant 0 : index
    %c0_38 = arith.constant 0 : index
    %c0_39 = arith.constant 0 : index
    %54 = vector.load %arg3[%c0_37, %c0_38, %c0_39] : memref<1x1x1xf32, #tpu.memory_space<vmem>>, vector<1x1x1xf32>
    %55 = vector.shape_cast %54 : vector<1x1x1xf32> to vector<1x1xf32>
    %56 = vector.shape_cast %53 : vector<1x1xf32> to vector<1x1x1xf32>
    tpu.vector_store %arg3[%c0_37, %c0_38, %c0_39], %56 {strides = array<i32>} : memref<1x1x1xf32, #tpu.memory_space<vmem>>, vector<1x1x1xf32>,
    return
  }
  func.func @transform_0(%arg0: i32) -> (i32, i32, i32) {
    %c0_i32 = arith.constant 0 : i32
    %c0_i32_0 = arith.constant 0 : i32
    %c0_i32_1 = arith.constant 0 : i32
    return %arg0, %c0_i32, %c0_i32_0 : i32, i32, i32
  }
  func.func @transform_1(%arg0: i32) -> (i32, i32, i32) {
    %c0_i32 = arith.constant 0 : i32
    %c0_i32_0 = arith.constant 0 : i32
    %c0_i32_1 = arith.constant 0 : i32
    return %arg0, %c0_i32, %c0_i32_0 : i32, i32, i32
  }
  func.func @transform_2(%arg0: i32) -> (i32, i32, i32) {
    %c0_i32 = arith.constant 0 : i32
    %c0_i32_0 = arith.constant 0 : i32
    %c0_i32_1 = arith.constant 0 : i32
    return %arg0, %c0_i32, %c0_i32_0 : i32, i32, i32
  }
}

</mosaic_0001>

<llo_original>
// kernel: tpu_custom_call.1
$region0: #{tpu_custom_call.1}
  #allocation0 [shape = 'u32[]', space=smem, size = 0x4, offset = 0x4, fixed_abs, tag = 'smem constant byte address 0x4 - core index']
  #allocation1 [shape = 'u32[72,128]{1,0:T(1,128)}', space=vmem, size = 0x9000, scoped, tag = 'internal scratch']
  #allocation2 [shape = 'f32[3,360,128]{2,1,0:T(8,128)}', space=vmem, size = 0x87000, scoped, tag = 'scratch operand']
  #allocation3 [shape = 'f32[360,128]{1,0:T(8,128)}', space=vmem, size = 0x2d000, scoped, tag = 'scratch operand']
  %s0 = inlined_call_operand.vmem [shape: f32[2,360,3], index: 0, kind: input, shape index: {}]
  %s1 = inlined_call_operand.vmem [shape: f32[2,3,128], index: 1, kind: input, shape index: {}]
  %s2 = inlined_call_operand.vmem [shape: f32[2,1,1], index: 2, kind: output, shape index: {}]
  %s3 = sld [smem:[#allocation0]]
  $region41: #{tpu_custom_call.1} parent=0
    _
  %s5 = ssub.s32 1, %s3
  %s6 = scalar_select 0, %s5, %s3
  loop: start=0, step=1, limit=4
  $region2: #{tpu_custom_call.1} parent=0 // loop_pre_header
    _
  $region3: #{tpu_custom_call.1} parent=0 // loop_header
    %s8 = sphi 0, %s12
    %p9 = scmp.ge.s32.totalorder %s8, 4
    %s18 = sphi 0, %s20
    %s21 = sphi 0, %s18
    %s22 = sphi 0, %s21
    %s38 = sphi 0, %s22
    %s44 = sphi 0, %s46
    %s47 = sphi 0, %s44
    %s48 = sphi 0, %s47
    %s64 = sphi 0, %s48
    %s70 = sphi 0, %s72
    %s73 = sphi 0, %s70
    %s74 = sphi 0, %s73
    %s90 = sphi 0, %s74
  $region4: #{tpu_custom_call.1} parent=0 // loop_header_branch
    %11 = sbr.rel (%p9) target = $region8
  $region5: #{tpu_custom_call.1} parent=0 // loop_body
    %s13 = ssub.s32 %s8, 1
    %s14 = ssub.s32 %s8, 2
    %s15 = sadd.s32 %s8, 1
    %s16 = ssub.s32 %s8, %s15
    %p17 = scmp.eq.s32.totalorder %s16, 0
    %s19 = sadd.s32 %s18, 1
    %s20 = scalar_select %p17, %s18, %s19
    %p23 = pneg %p17
    %p24 = scmp.eq.s32.totalorder %s8, 1
    %p25 = por %p23, %p24
    %p26 = scmp.ne.s32.totalorder %s18, %s21
    %p27 = scmp.eq.s32.totalorder %s8, 0
    %p28 = por %p26, %p27
    %p29 = scmp.ne.s32.totalorder %s18, %s21
    %p30 = scmp.eq.s32.totalorder %s13, 1
    %p31 = por %p29, %p30
    %p32 = scmp.ne.s32.totalorder %s21, %s22
    %p33 = scmp.eq.s32.totalorder %s13, 0
    %p34 = por %p32, %p33
    %p35 = scmp.ne.s32.totalorder %s21, %s22
    %p36 = scmp.eq.s32.totalorder %s14, 1
    %p37 = por %p35, %p36
    %p39 = scmp.ne.s32.totalorder %s22, %s38
    %p40 = scmp.eq.s32.totalorder %s14, 0
    %p41 = por %p39, %p40
    %s42 = ssub.s32 %s8, %s15
    %p43 = scmp.eq.s32.totalorder %s42, 0
    %s45 = sadd.s32 %s44, 1
    %s46 = scalar_select %p43, %s44, %s45
    %p49 = pneg %p43
    %p50 = scmp.eq.s32.totalorder %s8, 1
    %p51 = por %p49, %p50
    %p52 = scmp.ne.s32.totalorder %s44, %s47
    %p53 = scmp.eq.s32.totalorder %s8, 0
    %p54 = por %p52, %p53
    %p55 = scmp.ne.s32.totalorder %s44, %s47
    %p56 = scmp.eq.s32.totalorder %s13, 1
    %p57 = por %p55, %p56
    %p58 = scmp.ne.s32.totalorder %s47, %s48
    %p59 = scmp.eq.s32.totalorder %s13, 0
    %p60 = por %p58, %p59
    %p61 = scmp.ne.s32.totalorder %s47, %s48
    %p62 = scmp.eq.s32.totalorder %s14, 1
    %p63 = por %p61, %p62
    %p65 = scmp.ne.s32.totalorder %s48, %s64
    %p66 = scmp.eq.s32.totalorder %s14, 0
    %p67 = por %p65, %p66
    %s68 = ssub.s32 %s8, %s15
    %p69 = scmp.eq.s32.totalorder %s68, 0
    %s71 = sadd.s32 %s70, 1
    %s72 = scalar_select %p69, %s70, %s71
    %p75 = pneg %p69
    %p76 = scmp.eq.s32.totalorder %s8, 1
    %p77 = por %p75, %p76
    %p78 = scmp.ne.s32.totalorder %s70, %s73
    %p79 = scmp.eq.s32.totalorder %s8, 0
    %p80 = por %p78, %p79
    %p81 = scmp.ne.s32.totalorder %s70, %s73
    %p82 = scmp.eq.s32.totalorder %s13, 1
    %p83 = por %p81, %p82
    %p84 = scmp.ne.s32.totalorder %s73, %s74
    %p85 = scmp.eq.s32.totalorder %s13, 0
    %p86 = por %p84, %p85
    %p87 = scmp.ne.s32.totalorder %s73, %s74
    %p88 = scmp.eq.s32.totalorder %s14, 1
    %p89 = por %p87, %p88
    %p91 = scmp.ne.s32.totalorder %s74, %s90
    %p92 = scmp.eq.s32.totalorder %s14, 0
    %p93 = por %p91, %p92
    %p94 = scmp.le.s32.totalorder 1, %s8
    %p95 = scmp.lt.s32.totalorder %s8, 3
    %p96 = pnand %p94, %p95
    %p97 = pneg %p96
    // Predicated region
    $region9: #{tpu_custom_call.1} parent=5 // pred_check
      _
    $region10: #{tpu_custom_call.1} parent=5 // pred_check_branch
      %99 = sbr.rel (%p96) target = $region12
    $region11: #{tpu_custom_call.1} parent=5 // pred_region
      %s100 = ssub.s32 %s8, 1
    $region12: #{tpu_custom_call.1} parent=5 // pred_fallthru
      _
    %p101 = scmp.lt.s32.totalorder %s8, 2
    // Predicated region
    $region13: #{tpu_custom_call.1} parent=5 // pred_check
      %p102 = pneg %p101
    $region14: #{tpu_custom_call.1} parent=5 // pred_check_branch
      %104 = sbr.rel (%p102) target = $region16
    $region15: #{tpu_custom_call.1} parent=5 // pred_region
      // Predicated region
      $region17: #{tpu_custom_call.1} parent=15 // pred_check
        %p105 = pneg %p28
      $region18: #{tpu_custom_call.1} parent=15 // pred_check_branch
        %107 = sbr.rel (%p105) target = $region20
      $region19: #{tpu_custom_call.1} parent=15 // pred_region
        %p108 = scmp.lt.s32.totalorder %s8, 1
        %s109 = scalar_select %p108, %s8, 1
        %s110 = smul.addr %s109, 45
        %s111 = smul.addr %s110, 8
        %s112 = scalar_lea.vmem %s0, %s111
      $region20: #{tpu_custom_call.1} parent=15 // pred_fallthru
        _
      // Predicated region
      $region21: #{tpu_custom_call.1} parent=15 // pred_check
        %p113 = pneg %p54
      $region22: #{tpu_custom_call.1} parent=15 // pred_check_branch
        %115 = sbr.rel (%p113) target = $region24
      $region23: #{tpu_custom_call.1} parent=15 // pred_region
        %p116 = scmp.lt.s32.totalorder %s8, 1
        %s117 = scalar_select %p116, %s8, 1
        %s118 = smul.addr %s117, 4
        %s119 = scalar_lea.vmem %s1, %s118
      $region24: #{tpu_custom_call.1} parent=15 // pred_fallthru
        _
    $region16: #{tpu_custom_call.1} parent=5 // pred_fallthru
      _
    %p120 = scmp.le.s32.totalorder 1, %s8
    %p121 = scmp.lt.s32.totalorder %s8, 3
    %p122 = pnand %p120, %p121
    %p123 = pneg %p122
    // Predicated region
    $region25: #{tpu_custom_call.1} parent=5 // pred_check
      _
    $region26: #{tpu_custom_call.1} parent=5 // pred_check_branch
      %125 = sbr.rel (%p122) target = $region28
    $region27: #{tpu_custom_call.1} parent=5 // pred_region
      %s126 = ssub.s32 %s8, 1
      %p127 = scmp.lt.s32.totalorder %s13, 1
      %s128 = scalar_select %p127, %s13, 1
      %s129 = smul.addr %s128, 45
      %s130 = smul.addr %s129, 8
      %s131 = scalar_lea.vmem %s0, %s130
      %p132 = pneg %p34
      %p133 = pneg %p31
      %p134 = scmp.lt.s32.totalorder %s13, 1
      %s135 = scalar_select %p134, %s13, 1
      %s136 = smul.addr %s135, 4
      %s137 = scalar_lea.vmem %s1, %s136
      %p138 = pneg %p60
      %p139 = pneg %p57
      %p140 = pneg %p86
      %p141 = pneg %p83
      %p142 = scmp.lt.s32.totalorder %s13, 1
      %s143 = scalar_select %p142, %s13, 1
      %s144 = scalar_lea.vmem %s2, %s143
      %p145 = scmp.lt.s32.totalorder %s13, 1
      %s146 = scalar_select %p145, %s13, 1
      %s147 = smul.addr %s146, 45
      %s148 = smul.addr %s147, 8
      %s149 = scalar_lea.vmem %s0, %s148
      %p150 = scmp.lt.s32.totalorder %s13, 1
      %s151 = scalar_select %p150, %s13, 1
      %s152 = smul.addr %s151, 4
      %s153 = scalar_lea.vmem %s1, %s152
      %p154 = scmp.lt.s32.totalorder %s13, 1
      %s155 = scalar_select %p154, %s13, 1
      %s156 = scalar_lea.vmem %s2, %s155
      %v157 = vld [vmem:[%s149] sm:$0xff]
      %v158 = vld [vmem:[%s149 + $0x8] sm:$0xff]
      %v159 = vld [vmem:[%s149 + $0x10] sm:$0xff]
      %v160 = vld [vmem:[%s149 + $0x18] sm:$0xff]
      %v161 = vld [vmem:[%s149 + $0x20] sm:$0xff]
      %v162 = vld [vmem:[%s149 + $0x28] sm:$0xff]
      %v163 = vld [vmem:[%s149 + $0x30] sm:$0xff]
      %v164 = vld [vmem:[%s149 + $0x38] sm:$0xff]
      %v165 = vld [vmem:[%s149 + $0x40] sm:$0xff]
      %v166 = vld [vmem:[%s149 + $0x48] sm:$0xff]
      %v167 = vld [vmem:[%s149 + $0x50] sm:$0xff]
      %v168 = vld [vmem:[%s149 + $0x58] sm:$0xff]
      %v169 = vld [vmem:[%s149 + $0x60] sm:$0xff]
      %v170 = vld [vmem:[%s149 + $0x68] sm:$0xff]
      %v171 = vld [vmem:[%s149 + $0x70] sm:$0xff]
      %v172 = vld [vmem:[%s149 + $0x78] sm:$0xff]
      %v173 = vld [vmem:[%s149 + $0x80] sm:$0xff]
      %v174 = vld [vmem:[%s149 + $0x88] sm:$0xff]
      %v175 = vld [vmem:[%s149 + $0x90] sm:$0xff]
      %v176 = vld [vmem:[%s149 + $0x98] sm:$0xff]
      %v177 = vld [vmem:[%s149 + $0xa0] sm:$0xff]
      %v178 = vld [vmem:[%s149 + $0xa8] sm:$0xff]
      %v179 = vld [vmem:[%s149 + $0xb0] sm:$0xff]
      %v180 = vld [vmem:[%s149 + $0xb8] sm:$0xff]
      %v181 = vld [vmem:[%s149 + $0xc0] sm:$0xff]
      %v182 = vld [vmem:[%s149 + $0xc8] sm:$0xff]
      %v183 = vld [vmem:[%s149 + $0xd0] sm:$0xff]
      %v184 = vld [vmem:[%s149 + $0xd8] sm:$0xff]
      %v185 = vld [vmem:[%s149 + $0xe0] sm:$0xff]
      %v186 = vld [vmem:[%s149 + $0xe8] sm:$0xff]
      %v187 = vld [vmem:[%s149 + $0xf0] sm:$0xff]
      %v188 = vld [vmem:[%s149 + $0xf8] sm:$0xff]
      %v189 = vld [vmem:[%s149 + $0x100] sm:$0xff]
      %v190 = vld [vmem:[%s149 + $0x108] sm:$0xff]
      %v191 = vld [vmem:[%s149 + $0x110] sm:$0xff]
      %v192 = vld [vmem:[%s149 + $0x118] sm:$0xff]
      %v193 = vld [vmem:[%s149 + $0x120] sm:$0xff]
      %v194 = vld [vmem:[%s149 + $0x128] sm:$0xff]
      %v195 = vld [vmem:[%s149 + $0x130] sm:$0xff]
      %v196 = vld [vmem:[%s149 + $0x138] sm:$0xff]
      %v197 = vld [vmem:[%s149 + $0x140] sm:$0xff]
      %v198 = vld [vmem:[%s149 + $0x148] sm:$0xff]
      %v199 = vld [vmem:[%s149 + $0x150] sm:$0xff]
      %v200 = vld [vmem:[%s149 + $0x158] sm:$0xff]
      %v201 = vld [vmem:[%s149 + $0x160] sm:$0xff]
      %203 = vset.pattern.permute.xlu0 0
      %204 = vperm.xlu0 %203, %v157
      %v205 = vpop.permute.xlu0 %204
      %208 = vset.pattern.permute.xlu0 0
      %209 = vperm.xlu0 %208, %v158
      %v210 = vpop.permute.xlu0 %209
      %213 = vset.pattern.permute.xlu0 0
      %214 = vperm.xlu0 %213, %v159
      %v215 = vpop.permute.xlu0 %214
      %218 = vset.pattern.permute.xlu0 0
      %219 = vperm.xlu0 %218, %v160
      %v220 = vpop.permute.xlu0 %219
      %223 = vset.pattern.permute.xlu0 0
      %224 = vperm.xlu0 %223, %v161
      %v225 = vpop.permute.xlu0 %224
      %228 = vset.pattern.permute.xlu0 0
      %229 = vperm.xlu0 %228, %v162
      %v230 = vpop.permute.xlu0 %229
      %233 = vset.pattern.permute.xlu0 0
      %234 = vperm.xlu0 %233, %v163
      %v235 = vpop.permute.xlu0 %234
      %238 = vset.pattern.permute.xlu0 0
      %239 = vperm.xlu0 %238, %v164
      %v240 = vpop.permute.xlu0 %239
      %243 = vset.pattern.permute.xlu0 0
      %244 = vperm.xlu0 %243, %v165
      %v245 = vpop.permute.xlu0 %244
      %248 = vset.pattern.permute.xlu0 0
      %249 = vperm.xlu0 %248, %v166
      %v250 = vpop.permute.xlu0 %249
      %253 = vset.pattern.permute.xlu0 0
      %254 = vperm.xlu0 %253, %v167
      %v255 = vpop.permute.xlu0 %254
      %258 = vset.pattern.permute.xlu0 0
      %259 = vperm.xlu0 %258, %v168
      %v260 = vpop.permute.xlu0 %259
      %263 = vset.pattern.permute.xlu0 0
      %264 = vperm.xlu0 %263, %v169
      %v265 = vpop.permute.xlu0 %264
      %268 = vset.pattern.permute.xlu0 0
      %269 = vperm.xlu0 %268, %v170
      %v270 = vpop.permute.xlu0 %269
      %273 = vset.pattern.permute.xlu0 0
      %274 = vperm.xlu0 %273, %v171
      %v275 = vpop.permute.xlu0 %274
      %278 = vset.pattern.permute.xlu0 0
      %279 = vperm.xlu0 %278, %v172
      %v280 = vpop.permute.xlu0 %279
      %283 = vset.pattern.permute.xlu0 0
      %284 = vperm.xlu0 %283, %v173
      %v285 = vpop.permute.xlu0 %284
      %288 = vset.pattern.permute.xlu0 0
      %289 = vperm.xlu0 %288, %v174
      %v290 = vpop.permute.xlu0 %289
      %293 = vset.pattern.permute.xlu0 0
      %294 = vperm.xlu0 %293, %v175
      %v295 = vpop.permute.xlu0 %294
      %298 = vset.pattern.permute.xlu0 0
      %299 = vperm.xlu0 %298, %v176
      %v300 = vpop.permute.xlu0 %299
      %303 = vset.pattern.permute.xlu0 0
      %304 = vperm.xlu0 %303, %v177
      %v305 = vpop.permute.xlu0 %304
      %308 = vset.pattern.permute.xlu0 0
      %309 = vperm.xlu0 %308, %v178
      %v310 = vpop.permute.xlu0 %309
      %313 = vset.pattern.permute.xlu0 0
      %314 = vperm.xlu0 %313, %v179
      %v315 = vpop.permute.xlu0 %314
      %318 = vset.pattern.permute.xlu0 0
      %319 = vperm.xlu0 %318, %v180
      %v320 = vpop.permute.xlu0 %319
      %323 = vset.pattern.permute.xlu0 0
      %324 = vperm.xlu0 %323, %v181
      %v325 = vpop.permute.xlu0 %324
      %328 = vset.pattern.permute.xlu0 0
      %329 = vperm.xlu0 %328, %v182
      %v330 = vpop.permute.xlu0 %329
      %333 = vset.pattern.permute.xlu0 0
      %334 = vperm.xlu0 %333, %v183
      %v335 = vpop.permute.xlu0 %334
      %338 = vset.pattern.permute.xlu0 0
      %339 = vperm.xlu0 %338, %v184
      %v340 = vpop.permute.xlu0 %339
      %343 = vset.pattern.permute.xlu0 0
      %344 = vperm.xlu0 %343, %v185
      %v345 = vpop.permute.xlu0 %344
      %348 = vset.pattern.permute.xlu0 0
      %349 = vperm.xlu0 %348, %v186
      %v350 = vpop.permute.xlu0 %349
      %353 = vset.pattern.permute.xlu0 0
      %354 = vperm.xlu0 %353, %v187
      %v355 = vpop.permute.xlu0 %354
      %358 = vset.pattern.permute.xlu0 0
      %359 = vperm.xlu0 %358, %v188
      %v360 = vpop.permute.xlu0 %359
      %363 = vset.pattern.permute.xlu0 0
      %364 = vperm.xlu0 %363, %v189
      %v365 = vpop.permute.xlu0 %364
      %368 = vset.pattern.permute.xlu0 0
      %369 = vperm.xlu0 %368, %v190
      %v370 = vpop.permute.xlu0 %369
      %373 = vset.pattern.permute.xlu0 0
      %374 = vperm.xlu0 %373, %v191
      %v375 = vpop.permute.xlu0 %374
      %378 = vset.pattern.permute.xlu0 0
      %379 = vperm.xlu0 %378, %v192
      %v380 = vpop.permute.xlu0 %379
      %383 = vset.pattern.permute.xlu0 0
      %384 = vperm.xlu0 %383, %v193
      %v385 = vpop.permute.xlu0 %384
      %388 = vset.pattern.permute.xlu0 0
      %389 = vperm.xlu0 %388, %v194
      %v390 = vpop.permute.xlu0 %389
      %393 = vset.pattern.permute.xlu0 0
      %394 = vperm.xlu0 %393, %v195
      %v395 = vpop.permute.xlu0 %394
      %398 = vset.pattern.permute.xlu0 0
      %399 = vperm.xlu0 %398, %v196
      %v400 = vpop.permute.xlu0 %399
      %403 = vset.pattern.permute.xlu0 0
      %404 = vperm.xlu0 %403, %v197
      %v405 = vpop.permute.xlu0 %404
      %408 = vset.pattern.permute.xlu0 0
      %409 = vperm.xlu0 %408, %v198
      %v410 = vpop.permute.xlu0 %409
      %413 = vset.pattern.permute.xlu0 0
      %414 = vperm.xlu0 %413, %v199
      %v415 = vpop.permute.xlu0 %414
      %418 = vset.pattern.permute.xlu0 0
      %419 = vperm.xlu0 %418, %v200
      %v420 = vpop.permute.xlu0 %419
      %423 = vset.pattern.permute.xlu0 0
      %424 = vperm.xlu0 %423, %v201
      %v425 = vpop.permute.xlu0 %424
      %427 = vst [vmem:[#allocation2] sm:$0xff] %v205
      %428 = vst [vmem:[#allocation2 + $0x8] sm:$0xff] %v210
      %429 = vst [vmem:[#allocation2 + $0x10] sm:$0xff] %v215
      %430 = vst [vmem:[#allocation2 + $0x18] sm:$0xff] %v220
      %431 = vst [vmem:[#allocation2 + $0x20] sm:$0xff] %v225
      %432 = vst [vmem:[#allocation2 + $0x28] sm:$0xff] %v230
      %433 = vst [vmem:[#allocation2 + $0x30] sm:$0xff] %v235
      %434 = vst [vmem:[#allocation2 + $0x38] sm:$0xff] %v240
      %435 = vst [vmem:[#allocation2 + $0x40] sm:$0xff] %v245
      %436 = vst [vmem:[#allocation2 + $0x48] sm:$0xff] %v250
      %437 = vst [vmem:[#allocation2 + $0x50] sm:$0xff] %v255
      %438 = vst [vmem:[#allocation2 + $0x58] sm:$0xff] %v260
      %439 = vst [vmem:[#allocation2 + $0x60] sm:$0xff] %v265
      %440 = vst [vmem:[#allocation2 + $0x68] sm:$0xff] %v270
      %441 = vst [vmem:[#allocation2 + $0x70] sm:$0xff] %v275
      %442 = vst [vmem:[#allocation2 + $0x78] sm:$0xff] %v280
      %443 = vst [vmem:[#allocation2 + $0x80] sm:$0xff] %v285
      %444 = vst [vmem:[#allocation2 + $0x88] sm:$0xff] %v290
      %445 = vst [vmem:[#allocation2 + $0x90] sm:$0xff] %v295
      %446 = vst [vmem:[#allocation2 + $0x98] sm:$0xff] %v300
      %447 = vst [vmem:[#allocation2 + $0xa0] sm:$0xff] %v305
      %448 = vst [vmem:[#allocation2 + $0xa8] sm:$0xff] %v310
      %449 = vst [vmem:[#allocation2 + $0xb0] sm:$0xff] %v315
      %450 = vst [vmem:[#allocation2 + $0xb8] sm:$0xff] %v320
      %451 = vst [vmem:[#allocation2 + $0xc0] sm:$0xff] %v325
      %452 = vst [vmem:[#allocation2 + $0xc8] sm:$0xff] %v330
      %453 = vst [vmem:[#allocation2 + $0xd0] sm:$0xff] %v335
      %454 = vst [vmem:[#allocation2 + $0xd8] sm:$0xff] %v340
      %455 = vst [vmem:[#allocation2 + $0xe0] sm:$0xff] %v345
      %456 = vst [vmem:[#allocation2 + $0xe8] sm:$0xff] %v350
      %457 = vst [vmem:[#allocation2 + $0xf0] sm:$0xff] %v355
      %458 = vst [vmem:[#allocation2 + $0xf8] sm:$0xff] %v360
      %459 = vst [vmem:[#allocation2 + $0x100] sm:$0xff] %v365
      %460 = vst [vmem:[#allocation2 + $0x108] sm:$0xff] %v370
      %461 = vst [vmem:[#allocation2 + $0x110] sm:$0xff] %v375
      %462 = vst [vmem:[#allocation2 + $0x118] sm:$0xff] %v380
      %463 = vst [vmem:[#allocation2 + $0x120] sm:$0xff] %v385
      %464 = vst [vmem:[#allocation2 + $0x128] sm:$0xff] %v390
      %465 = vst [vmem:[#allocation2 + $0x130] sm:$0xff] %v395
      %466 = vst [vmem:[#allocation2 + $0x138] sm:$0xff] %v400
      %467 = vst [vmem:[#allocation2 + $0x140] sm:$0xff] %v405
      %468 = vst [vmem:[#allocation2 + $0x148] sm:$0xff] %v410
      %469 = vst [vmem:[#allocation2 + $0x150] sm:$0xff] %v415
      %470 = vst [vmem:[#allocation2 + $0x158] sm:$0xff] %v420
      %471 = vst [vmem:[#allocation2 + $0x160] sm:$0xff] %v425
      %472 = vset.pattern.permute.xlu0 1
      %473 = vperm.xlu0 %472, %v157
      %v474 = vpop.permute.xlu0 %473
      %476 = vset.pattern.permute.xlu0 1
      %477 = vperm.xlu0 %476, %v158
      %v478 = vpop.permute.xlu0 %477
      %480 = vset.pattern.permute.xlu0 1
      %481 = vperm.xlu0 %480, %v159
      %v482 = vpop.permute.xlu0 %481
      %484 = vset.pattern.permute.xlu0 1
      %485 = vperm.xlu0 %484, %v160
      %v486 = vpop.permute.xlu0 %485
      %488 = vset.pattern.permute.xlu0 1
      %489 = vperm.xlu0 %488, %v161
      %v490 = vpop.permute.xlu0 %489
      %492 = vset.pattern.permute.xlu0 1
      %493 = vperm.xlu0 %492, %v162
      %v494 = vpop.permute.xlu0 %493
      %496 = vset.pattern.permute.xlu0 1
      %497 = vperm.xlu0 %496, %v163
      %v498 = vpop.permute.xlu0 %497
      %500 = vset.pattern.permute.xlu0 1
      %501 = vperm.xlu0 %500, %v164
      %v502 = vpop.permute.xlu0 %501
      %504 = vset.pattern.permute.xlu0 1
      %505 = vperm.xlu0 %504, %v165
      %v506 = vpop.permute.xlu0 %505
      %508 = vset.pattern.permute.xlu0 1
      %509 = vperm.xlu0 %508, %v166
      %v510 = vpop.permute.xlu0 %509
      %512 = vset.pattern.permute.xlu0 1
      %513 = vperm.xlu0 %512, %v167
      %v514 = vpop.permute.xlu0 %513
      %516 = vset.pattern.permute.xlu0 1
      %517 = vperm.xlu0 %516, %v168
      %v518 = vpop.permute.xlu0 %517
      %520 = vset.pattern.permute.xlu0 1
      %521 = vperm.xlu0 %520, %v169
      %v522 = vpop.permute.xlu0 %521
      %524 = vset.pattern.permute.xlu0 1
      %525 = vperm.xlu0 %524, %v170
      %v526 = vpop.permute.xlu0 %525
      %528 = vset.pattern.permute.xlu0 1
      %529 = vperm.xlu0 %528, %v171
      %v530 = vpop.permute.xlu0 %529
      %532 = vset.pattern.permute.xlu0 1
      %533 = vperm.xlu0 %532, %v172
      %v534 = vpop.permute.xlu0 %533
      %536 = vset.pattern.permute.xlu0 1
      %537 = vperm.xlu0 %536, %v173
      %v538 = vpop.permute.xlu0 %537
      %540 = vset.pattern.permute.xlu0 1
      %541 = vperm.xlu0 %540, %v174
      %v542 = vpop.permute.xlu0 %541
      %544 = vset.pattern.permute.xlu0 1
      %545 = vperm.xlu0 %544, %v175
      %v546 = vpop.permute.xlu0 %545
      %548 = vset.pattern.permute.xlu0 1
      %549 = vperm.xlu0 %548, %v176
      %v550 = vpop.permute.xlu0 %549
      %552 = vset.pattern.permute.xlu0 1
      %553 = vperm.xlu0 %552, %v177
      %v554 = vpop.permute.xlu0 %553
      %556 = vset.pattern.permute.xlu0 1
      %557 = vperm.xlu0 %556, %v178
      %v558 = vpop.permute.xlu0 %557
      %560 = vset.pattern.permute.xlu0 1
      %561 = vperm.xlu0 %560, %v179
      %v562 = vpop.permute.xlu0 %561
      %564 = vset.pattern.permute.xlu0 1
      %565 = vperm.xlu0 %564, %v180
      %v566 = vpop.permute.xlu0 %565
      %568 = vset.pattern.permute.xlu0 1
      %569 = vperm.xlu0 %568, %v181
      %v570 = vpop.permute.xlu0 %569
      %572 = vset.pattern.permute.xlu0 1
      %573 = vperm.xlu0 %572, %v182
      %v574 = vpop.permute.xlu0 %573
      %576 = vset.pattern.permute.xlu0 1
      %577 = vperm.xlu0 %576, %v183
      %v578 = vpop.permute.xlu0 %577
      %580 = vset.pattern.permute.xlu0 1
      %581 = vperm.xlu0 %580, %v184
      %v582 = vpop.permute.xlu0 %581
      %584 = vset.pattern.permute.xlu0 1
      %585 = vperm.xlu0 %584, %v185
      %v586 = vpop.permute.xlu0 %585
      %588 = vset.pattern.permute.xlu0 1
      %589 = vperm.xlu0 %588, %v186
      %v590 = vpop.permute.xlu0 %589
      %592 = vset.pattern.permute.xlu0 1
      %593 = vperm.xlu0 %592, %v187
      %v594 = vpop.permute.xlu0 %593
      %596 = vset.pattern.permute.xlu0 1
      %597 = vperm.xlu0 %596, %v188
      %v598 = vpop.permute.xlu0 %597
      %600 = vset.pattern.permute.xlu0 1
      %601 = vperm.xlu0 %600, %v189
      %v602 = vpop.permute.xlu0 %601
      %604 = vset.pattern.permute.xlu0 1
      %605 = vperm.xlu0 %604, %v190
      %v606 = vpop.permute.xlu0 %605
      %608 = vset.pattern.permute.xlu0 1
      %609 = vperm.xlu0 %608, %v191
      %v610 = vpop.permute.xlu0 %609
      %612 = vset.pattern.permute.xlu0 1
      %613 = vperm.xlu0 %612, %v192
      %v614 = vpop.permute.xlu0 %613
      %616 = vset.pattern.permute.xlu0 1
      %617 = vperm.xlu0 %616, %v193
      %v618 = vpop.permute.xlu0 %617
      %620 = vset.pattern.permute.xlu0 1
      %621 = vperm.xlu0 %620, %v194
      %v622 = vpop.permute.xlu0 %621
      %624 = vset.pattern.permute.xlu0 1
      %625 = vperm.xlu0 %624, %v195
      %v626 = vpop.permute.xlu0 %625
      %628 = vset.pattern.permute.xlu0 1
      %629 = vperm.xlu0 %628, %v196
      %v630 = vpop.permute.xlu0 %629
      %632 = vset.pattern.permute.xlu0 1
      %633 = vperm.xlu0 %632, %v197
      %v634 = vpop.permute.xlu0 %633
      %636 = vset.pattern.permute.xlu0 1
      %637 = vperm.xlu0 %636, %v198
      %v638 = vpop.permute.xlu0 %637
      %640 = vset.pattern.permute.xlu0 1
      %641 = vperm.xlu0 %640, %v199
      %v642 = vpop.permute.xlu0 %641
      %644 = vset.pattern.permute.xlu0 1
      %645 = vperm.xlu0 %644, %v200
      %v646 = vpop.permute.xlu0 %645
      %648 = vset.pattern.permute.xlu0 1
      %649 = vperm.xlu0 %648, %v201
      %v650 = vpop.permute.xlu0 %649
      %s652 = scalar_lea.vmem [#allocation2], 360
      %653 = vst [vmem:[%s652] sm:$0xff] %v474
      %654 = vst [vmem:[%s652 + $0x8] sm:$0xff] %v478
      %655 = vst [vmem:[%s652 + $0x10] sm:$0xff] %v482
      %656 = vst [vmem:[%s652 + $0x18] sm:$0xff] %v486
      %657 = vst [vmem:[%s652 + $0x20] sm:$0xff] %v490
      %658 = vst [vmem:[%s652 + $0x28] sm:$0xff] %v494
      %659 = vst [vmem:[%s652 + $0x30] sm:$0xff] %v498
      %660 = vst [vmem:[%s652 + $0x38] sm:$0xff] %v502
      %661 = vst [vmem:[%s652 + $0x40] sm:$0xff] %v506
      %662 = vst [vmem:[%s652 + $0x48] sm:$0xff] %v510
      %663 = vst [vmem:[%s652 + $0x50] sm:$0xff] %v514
      %664 = vst [vmem:[%s652 + $0x58] sm:$0xff] %v518
      %665 = vst [vmem:[%s652 + $0x60] sm:$0xff] %v522
      %666 = vst [vmem:[%s652 + $0x68] sm:$0xff] %v526
      %667 = vst [vmem:[%s652 + $0x70] sm:$0xff] %v530
      %668 = vst [vmem:[%s652 + $0x78] sm:$0xff] %v534
      %669 = vst [vmem:[%s652 + $0x80] sm:$0xff] %v538
      %670 = vst [vmem:[%s652 + $0x88] sm:$0xff] %v542
      %671 = vst [vmem:[%s652 + $0x90] sm:$0xff] %v546
      %672 = vst [vmem:[%s652 + $0x98] sm:$0xff] %v550
      %673 = vst [vmem:[%s652 + $0xa0] sm:$0xff] %v554
      %674 = vst [vmem:[%s652 + $0xa8] sm:$0xff] %v558
      %675 = vst [vmem:[%s652 + $0xb0] sm:$0xff] %v562
      %676 = vst [vmem:[%s652 + $0xb8] sm:$0xff] %v566
      %677 = vst [vmem:[%s652 + $0xc0] sm:$0xff] %v570
      %678 = vst [vmem:[%s652 + $0xc8] sm:$0xff] %v574
      %679 = vst [vmem:[%s652 + $0xd0] sm:$0xff] %v578
      %680 = vst [vmem:[%s652 + $0xd8] sm:$0xff] %v582
      %681 = vst [vmem:[%s652 + $0xe0] sm:$0xff] %v586
      %682 = vst [vmem:[%s652 + $0xe8] sm:$0xff] %v590
      %683 = vst [vmem:[%s652 + $0xf0] sm:$0xff] %v594
      %684 = vst [vmem:[%s652 + $0xf8] sm:$0xff] %v598
      %685 = vst [vmem:[%s652 + $0x100] sm:$0xff] %v602
      %686 = vst [vmem:[%s652 + $0x108] sm:$0xff] %v606
      %687 = vst [vmem:[%s652 + $0x110] sm:$0xff] %v610
      %688 = vst [vmem:[%s652 + $0x118] sm:$0xff] %v614
      %689 = vst [vmem:[%s652 + $0x120] sm:$0xff] %v618
      %690 = vst [vmem:[%s652 + $0x128] sm:$0xff] %v622
      %691 = vst [vmem:[%s652 + $0x130] sm:$0xff] %v626
      %692 = vst [vmem:[%s652 + $0x138] sm:$0xff] %v630
      %693 = vst [vmem:[%s652 + $0x140] sm:$0xff] %v634
      %694 = vst [vmem:[%s652 + $0x148] sm:$0xff] %v638
      %695 = vst [vmem:[%s652 + $0x150] sm:$0xff] %v642
      %696 = vst [vmem:[%s652 + $0x158] sm:$0xff] %v646
      %697 = vst [vmem:[%s652 + $0x160] sm:$0xff] %v650
      %698 = vset.pattern.permute.xlu0 2
      %699 = vperm.xlu0 %698, %v157
      %v700 = vpop.permute.xlu0 %699
      %702 = vset.pattern.permute.xlu0 2
      %703 = vperm.xlu0 %702, %v158
      %v704 = vpop.permute.xlu0 %703
      %706 = vset.pattern.permute.xlu0 2
      %707 = vperm.xlu0 %706, %v159
      %v708 = vpop.permute.xlu0 %707
      %710 = vset.pattern.permute.xlu0 2
      %711 = vperm.xlu0 %710, %v160
      %v712 = vpop.permute.xlu0 %711
      %714 = vset.pattern.permute.xlu0 2
      %715 = vperm.xlu0 %714, %v161
      %v716 = vpop.permute.xlu0 %715
      %718 = vset.pattern.permute.xlu0 2
      %719 = vperm.xlu0 %718, %v162
      %v720 = vpop.permute.xlu0 %719
      %722 = vset.pattern.permute.xlu0 2
      %723 = vperm.xlu0 %722, %v163
      %v724 = vpop.permute.xlu0 %723
      %726 = vset.pattern.permute.xlu0 2
      %727 = vperm.xlu0 %726, %v164
      %v728 = vpop.permute.xlu0 %727
      %730 = vset.pattern.permute.xlu0 2
      %731 = vperm.xlu0 %730, %v165
      %v732 = vpop.permute.xlu0 %731
      %734 = vset.pattern.permute.xlu0 2
      %735 = vperm.xlu0 %734, %v166
      %v736 = vpop.permute.xlu0 %735
      %738 = vset.pattern.permute.xlu0 2
      %739 = vperm.xlu0 %738, %v167
      %v740 = vpop.permute.xlu0 %739
      %742 = vset.pattern.permute.xlu0 2
      %743 = vperm.xlu0 %742, %v168
      %v744 = vpop.permute.xlu0 %743
      %746 = vset.pattern.permute.xlu0 2
      %747 = vperm.xlu0 %746, %v169
      %v748 = vpop.permute.xlu0 %747
      %750 = vset.pattern.permute.xlu0 2
      %751 = vperm.xlu0 %750, %v170
      %v752 = vpop.permute.xlu0 %751
      %754 = vset.pattern.permute.xlu0 2
      %755 = vperm.xlu0 %754, %v171
      %v756 = vpop.permute.xlu0 %755
      %758 = vset.pattern.permute.xlu0 2
      %759 = vperm.xlu0 %758, %v172
      %v760 = vpop.permute.xlu0 %759
      %762 = vset.pattern.permute.xlu0 2
      %763 = vperm.xlu0 %762, %v173
      %v764 = vpop.permute.xlu0 %763
      %766 = vset.pattern.permute.xlu0 2
      %767 = vperm.xlu0 %766, %v174
      %v768 = vpop.permute.xlu0 %767
      %770 = vset.pattern.permute.xlu0 2
      %771 = vperm.xlu0 %770, %v175
      %v772 = vpop.permute.xlu0 %771
      %774 = vset.pattern.permute.xlu0 2
      %775 = vperm.xlu0 %774, %v176
      %v776 = vpop.permute.xlu0 %775
      %778 = vset.pattern.permute.xlu0 2
      %779 = vperm.xlu0 %778, %v177
      %v780 = vpop.permute.xlu0 %779
      %782 = vset.pattern.permute.xlu0 2
      %783 = vperm.xlu0 %782, %v178
      %v784 = vpop.permute.xlu0 %783
      %786 = vset.pattern.permute.xlu0 2
      %787 = vperm.xlu0 %786, %v179
      %v788 = vpop.permute.xlu0 %787
      %790 = vset.pattern.permute.xlu0 2
      %791 = vperm.xlu0 %790, %v180
      %v792 = vpop.permute.xlu0 %791
      %794 = vset.pattern.permute.xlu0 2
      %795 = vperm.xlu0 %794, %v181
      %v796 = vpop.permute.xlu0 %795
      %798 = vset.pattern.permute.xlu0 2
      %799 = vperm.xlu0 %798, %v182
      %v800 = vpop.permute.xlu0 %799
      %802 = vset.pattern.permute.xlu0 2
      %803 = vperm.xlu0 %802, %v183
      %v804 = vpop.permute.xlu0 %803
      %806 = vset.pattern.permute.xlu0 2
      %807 = vperm.xlu0 %806, %v184
      %v808 = vpop.permute.xlu0 %807
      %810 = vset.pattern.permute.xlu0 2
      %811 = vperm.xlu0 %810, %v185
      %v812 = vpop.permute.xlu0 %811
      %814 = vset.pattern.permute.xlu0 2
      %815 = vperm.xlu0 %814, %v186
      %v816 = vpop.permute.xlu0 %815
      %818 = vset.pattern.permute.xlu0 2
      %819 = vperm.xlu0 %818, %v187
      %v820 = vpop.permute.xlu0 %819
      %822 = vset.pattern.permute.xlu0 2
      %823 = vperm.xlu0 %822, %v188
      %v824 = vpop.permute.xlu0 %823
      %826 = vset.pattern.permute.xlu0 2
      %827 = vperm.xlu0 %826, %v189
      %v828 = vpop.permute.xlu0 %827
      %830 = vset.pattern.permute.xlu0 2
      %831 = vperm.xlu0 %830, %v190
      %v832 = vpop.permute.xlu0 %831
      %834 = vset.pattern.permute.xlu0 2
      %835 = vperm.xlu0 %834, %v191
      %v836 = vpop.permute.xlu0 %835
      %838 = vset.pattern.permute.xlu0 2
      %839 = vperm.xlu0 %838, %v192
      %v840 = vpop.permute.xlu0 %839
      %842 = vset.pattern.permute.xlu0 2
      %843 = vperm.xlu0 %842, %v193
      %v844 = vpop.permute.xlu0 %843
      %846 = vset.pattern.permute.xlu0 2
      %847 = vperm.xlu0 %846, %v194
      %v848 = vpop.permute.xlu0 %847
      %850 = vset.pattern.permute.xlu0 2
      %851 = vperm.xlu0 %850, %v195
      %v852 = vpop.permute.xlu0 %851
      %854 = vset.pattern.permute.xlu0 2
      %855 = vperm.xlu0 %854, %v196
      %v856 = vpop.permute.xlu0 %855
      %858 = vset.pattern.permute.xlu0 2
      %859 = vperm.xlu0 %858, %v197
      %v860 = vpop.permute.xlu0 %859
      %862 = vset.pattern.permute.xlu0 2
      %863 = vperm.xlu0 %862, %v198
      %v864 = vpop.permute.xlu0 %863
      %866 = vset.pattern.permute.xlu0 2
      %867 = vperm.xlu0 %866, %v199
      %v868 = vpop.permute.xlu0 %867
      %870 = vset.pattern.permute.xlu0 2
      %871 = vperm.xlu0 %870, %v200
      %v872 = vpop.permute.xlu0 %871
      %874 = vset.pattern.permute.xlu0 2
      %875 = vperm.xlu0 %874, %v201
      %v876 = vpop.permute.xlu0 %875
      %s878 = scalar_lea.vmem [#allocation2], 720
      %879 = vst [vmem:[%s878] sm:$0xff] %v700
      %880 = vst [vmem:[%s878 + $0x8] sm:$0xff] %v704
      %881 = vst [vmem:[%s878 + $0x10] sm:$0xff] %v708
      %882 = vst [vmem:[%s878 + $0x18] sm:$0xff] %v712
      %883 = vst [vmem:[%s878 + $0x20] sm:$0xff] %v716
      %884 = vst [vmem:[%s878 + $0x28] sm:$0xff] %v720
      %885 = vst [vmem:[%s878 + $0x30] sm:$0xff] %v724
      %886 = vst [vmem:[%s878 + $0x38] sm:$0xff] %v728
      %887 = vst [vmem:[%s878 + $0x40] sm:$0xff] %v732
      %888 = vst [vmem:[%s878 + $0x48] sm:$0xff] %v736
      %889 = vst [vmem:[%s878 + $0x50] sm:$0xff] %v740
      %890 = vst [vmem:[%s878 + $0x58] sm:$0xff] %v744
      %891 = vst [vmem:[%s878 + $0x60] sm:$0xff] %v748
      %892 = vst [vmem:[%s878 + $0x68] sm:$0xff] %v752
      %893 = vst [vmem:[%s878 + $0x70] sm:$0xff] %v756
      %894 = vst [vmem:[%s878 + $0x78] sm:$0xff] %v760
      %895 = vst [vmem:[%s878 + $0x80] sm:$0xff] %v764
      %896 = vst [vmem:[%s878 + $0x88] sm:$0xff] %v768
      %897 = vst [vmem:[%s878 + $0x90] sm:$0xff] %v772
      %898 = vst [vmem:[%s878 + $0x98] sm:$0xff] %v776
      %899 = vst [vmem:[%s878 + $0xa0] sm:$0xff] %v780
      %900 = vst [vmem:[%s878 + $0xa8] sm:$0xff] %v784
      %901 = vst [vmem:[%s878 + $0xb0] sm:$0xff] %v788
      %902 = vst [vmem:[%s878 + $0xb8] sm:$0xff] %v792
      %903 = vst [vmem:[%s878 + $0xc0] sm:$0xff] %v796
      %904 = vst [vmem:[%s878 + $0xc8] sm:$0xff] %v800
      %905 = vst [vmem:[%s878 + $0xd0] sm:$0xff] %v804
      %906 = vst [vmem:[%s878 + $0xd8] sm:$0xff] %v808
      %907 = vst [vmem:[%s878 + $0xe0] sm:$0xff] %v812
      %908 = vst [vmem:[%s878 + $0xe8] sm:$0xff] %v816
      %909 = vst [vmem:[%s878 + $0xf0] sm:$0xff] %v820
      %910 = vst [vmem:[%s878 + $0xf8] sm:$0xff] %v824
      %911 = vst [vmem:[%s878 + $0x100] sm:$0xff] %v828
      %912 = vst [vmem:[%s878 + $0x108] sm:$0xff] %v832
      %913 = vst [vmem:[%s878 + $0x110] sm:$0xff] %v836
      %914 = vst [vmem:[%s878 + $0x118] sm:$0xff] %v840
      %915 = vst [vmem:[%s878 + $0x120] sm:$0xff] %v844
      %916 = vst [vmem:[%s878 + $0x128] sm:$0xff] %v848
      %917 = vst [vmem:[%s878 + $0x130] sm:$0xff] %v852
      %918 = vst [vmem:[%s878 + $0x138] sm:$0xff] %v856
      %919 = vst [vmem:[%s878 + $0x140] sm:$0xff] %v860
      %920 = vst [vmem:[%s878 + $0x148] sm:$0xff] %v864
      %921 = vst [vmem:[%s878 + $0x150] sm:$0xff] %v868
      %922 = vst [vmem:[%s878 + $0x158] sm:$0xff] %v872
      %923 = vst [vmem:[%s878 + $0x160] sm:$0xff] %v876
      %924 = vst [vmem:[#allocation3] sm:$0xff] 3.4028235e+38
      %925 = vst [vmem:[#allocation3 + $0x8] sm:$0xff] 3.4028235e+38
      %926 = vst [vmem:[#allocation3 + $0x10] sm:$0xff] 3.4028235e+38
      %927 = vst [vmem:[#allocation3 + $0x18] sm:$0xff] 3.4028235e+38
      %928 = vst [vmem:[#allocation3 + $0x20] sm:$0xff] 3.4028235e+38
      %929 = vst [vmem:[#allocation3 + $0x28] sm:$0xff] 3.4028235e+38
      %930 = vst [vmem:[#allocation3 + $0x30] sm:$0xff] 3.4028235e+38
      %931 = vst [vmem:[#allocation3 + $0x38] sm:$0xff] 3.4028235e+38
      %932 = vst [vmem:[#allocation3 + $0x40] sm:$0xff] 3.4028235e+38
      %933 = vst [vmem:[#allocation3 + $0x48] sm:$0xff] 3.4028235e+38
      %934 = vst [vmem:[#allocation3 + $0x50] sm:$0xff] 3.4028235e+38
      %935 = vst [vmem:[#allocation3 + $0x58] sm:$0xff] 3.4028235e+38
      %936 = vst [vmem:[#allocation3 + $0x60] sm:$0xff] 3.4028235e+38
      %937 = vst [vmem:[#allocation3 + $0x68] sm:$0xff] 3.4028235e+38
      %938 = vst [vmem:[#allocation3 + $0x70] sm:$0xff] 3.4028235e+38
      %939 = vst [vmem:[#allocation3 + $0x78] sm:$0xff] 3.4028235e+38
      %940 = vst [vmem:[#allocation3 + $0x80] sm:$0xff] 3.4028235e+38
      %941 = vst [vmem:[#allocation3 + $0x88] sm:$0xff] 3.4028235e+38
      %942 = vst [vmem:[#allocation3 + $0x90] sm:$0xff] 3.4028235e+38
      %943 = vst [vmem:[#allocation3 + $0x98] sm:$0xff] 3.4028235e+38
      %944 = vst [vmem:[#allocation3 + $0xa0] sm:$0xff] 3.4028235e+38
      %945 = vst [vmem:[#allocation3 + $0xa8] sm:$0xff] 3.4028235e+38
      %946 = vst [vmem:[#allocation3 + $0xb0] sm:$0xff] 3.4028235e+38
      %947 = vst [vmem:[#allocation3 + $0xb8] sm:$0xff] 3.4028235e+38
      %948 = vst [vmem:[#allocation3 + $0xc0] sm:$0xff] 3.4028235e+38
      %949 = vst [vmem:[#allocation3 + $0xc8] sm:$0xff] 3.4028235e+38
      %950 = vst [vmem:[#allocation3 + $0xd0] sm:$0xff] 3.4028235e+38
      %951 = vst [vmem:[#allocation3 + $0xd8] sm:$0xff] 3.4028235e+38
      %952 = vst [vmem:[#allocation3 + $0xe0] sm:$0xff] 3.4028235e+38
      %953 = vst [vmem:[#allocation3 + $0xe8] sm:$0xff] 3.4028235e+38
      %954 = vst [vmem:[#allocation3 + $0xf0] sm:$0xff] 3.4028235e+38
      %955 = vst [vmem:[#allocation3 + $0xf8] sm:$0xff] 3.4028235e+38
      %956 = vst [vmem:[#allocation3 + $0x100] sm:$0xff] 3.4028235e+38
      %957 = vst [vmem:[#allocation3 + $0x108] sm:$0xff] 3.4028235e+38
      %958 = vst [vmem:[#allocation3 + $0x110] sm:$0xff] 3.4028235e+38
      %959 = vst [vmem:[#allocation3 + $0x118] sm:$0xff] 3.4028235e+38
      %960 = vst [vmem:[#allocation3 + $0x120] sm:$0xff] 3.4028235e+38
      %961 = vst [vmem:[#allocation3 + $0x128] sm:$0xff] 3.4028235e+38
      %962 = vst [vmem:[#allocation3 + $0x130] sm:$0xff] 3.4028235e+38
      %963 = vst [vmem:[#allocation3 + $0x138] sm:$0xff] 3.4028235e+38
      %964 = vst [vmem:[#allocation3 + $0x140] sm:$0xff] 3.4028235e+38
      %965 = vst [vmem:[#allocation3 + $0x148] sm:$0xff] 3.4028235e+38
      %966 = vst [vmem:[#allocation3 + $0x150] sm:$0xff] 3.4028235e+38
      %967 = vst [vmem:[#allocation3 + $0x158] sm:$0xff] 3.4028235e+38
      %968 = vst [vmem:[#allocation3 + $0x160] sm:$0xff] 3.4028235e+38
      %v969 = vld [vmem:[%s153] sm:$0x1]
      %v970 = vld [vmem:[%s153 + $0x1] sm:$0x1]
      %v971 = vld [vmem:[%s153 + $0x2] sm:$0x1]
      %v972 = vld [vmem:[#allocation2] sm:$0xff]
      %v973 = vld [vmem:[#allocation2 + $0x8] sm:$0xff]
      %v974 = vld [vmem:[#allocation2 + $0x10] sm:$0xff]
      %v975 = vld [vmem:[#allocation2 + $0x18] sm:$0xff]
      %v976 = vld [vmem:[#allocation2 + $0x20] sm:$0xff]
      %v977 = vld [vmem:[#allocation2 + $0x28] sm:$0xff]
      %v978 = vld [vmem:[#allocation2 + $0x30] sm:$0xff]
      %v979 = vld [vmem:[#allocation2 + $0x38] sm:$0xff]
      %v980 = vld [vmem:[#allocation2 + $0x40] sm:$0xff]
      %v981 = vld [vmem:[#allocation2 + $0x48] sm:$0xff]
      %v982 = vld [vmem:[#allocation2 + $0x50] sm:$0xff]
      %v983 = vld [vmem:[#allocation2 + $0x58] sm:$0xff]
      %v984 = vld [vmem:[#allocation2 + $0x60] sm:$0xff]
      %v985 = vld [vmem:[#allocation2 + $0x68] sm:$0xff]
      %v986 = vld [vmem:[#allocation2 + $0x70] sm:$0xff]
      %v987 = vld [vmem:[#allocation2 + $0x78] sm:$0xff]
      %v988 = vld [vmem:[#allocation2 + $0x80] sm:$0xff]
      %v989 = vld [vmem:[#allocation2 + $0x88] sm:$0xff]
      %v990 = vld [vmem:[#allocation2 + $0x90] sm:$0xff]
      %v991 = vld [vmem:[#allocation2 + $0x98] sm:$0xff]
      %v992 = vld [vmem:[#allocation2 + $0xa0] sm:$0xff]
      %v993 = vld [vmem:[#allocation2 + $0xa8] sm:$0xff]
      %v994 = vld [vmem:[#allocation2 + $0xb0] sm:$0xff]
      %v995 = vld [vmem:[#allocation2 + $0xb8] sm:$0xff]
      %v996 = vld [vmem:[#allocation2 + $0xc0] sm:$0xff]
      %v997 = vld [vmem:[#allocation2 + $0xc8] sm:$0xff]
      %v998 = vld [vmem:[#allocation2 + $0xd0] sm:$0xff]
      %v999 = vld [vmem:[#allocation2 + $0xd8] sm:$0xff]
      %v1000 = vld [vmem:[#allocation2 + $0xe0] sm:$0xff]
      %v1001 = vld [vmem:[#allocation2 + $0xe8] sm:$0xff]
      %v1002 = vld [vmem:[#allocation2 + $0xf0] sm:$0xff]
      %v1003 = vld [vmem:[#allocation2 + $0xf8] sm:$0xff]
      %v1004 = vld [vmem:[#allocation2 + $0x100] sm:$0xff]
      %v1005 = vld [vmem:[#allocation2 + $0x108] sm:$0xff]
      %v1006 = vld [vmem:[#allocation2 + $0x110] sm:$0xff]
      %v1007 = vld [vmem:[#allocation2 + $0x118] sm:$0xff]
      %v1008 = vld [vmem:[#allocation2 + $0x120] sm:$0xff]
      %v1009 = vld [vmem:[#allocation2 + $0x128] sm:$0xff]
      %v1010 = vld [vmem:[#allocation2 + $0x130] sm:$0xff]
      %v1011 = vld [vmem:[#allocation2 + $0x138] sm:$0xff]
      %v1012 = vld [vmem:[#allocation2 + $0x140] sm:$0xff]
      %v1013 = vld [vmem:[#allocation2 + $0x148] sm:$0xff]
      %v1014 = vld [vmem:[#allocation2 + $0x150] sm:$0xff]
      %v1015 = vld [vmem:[#allocation2 + $0x158] sm:$0xff]
      %v1016 = vld [vmem:[#allocation2 + $0x160] sm:$0xff]
      %v1017 = vperm.slane %v969, 0
      %v1018 = vsub.f32 %v972, %v1017
      %v1019 = vsub.f32 %v973, %v1017
      %v1020 = vsub.f32 %v974, %v1017
      %v1021 = vsub.f32 %v975, %v1017
      %v1022 = vsub.f32 %v976, %v1017
      %v1023 = vsub.f32 %v977, %v1017
      %v1024 = vsub.f32 %v978, %v1017
      %v1025 = vsub.f32 %v979, %v1017
      %v1026 = vsub.f32 %v980, %v1017
      %v1027 = vsub.f32 %v981, %v1017
      %v1028 = vsub.f32 %v982, %v1017
      %v1029 = vsub.f32 %v983, %v1017
      %v1030 = vsub.f32 %v984, %v1017
      %v1031 = vsub.f32 %v985, %v1017
      %v1032 = vsub.f32 %v986, %v1017
      %v1033 = vsub.f32 %v987, %v1017
      %v1034 = vsub.f32 %v988, %v1017
      %v1035 = vsub.f32 %v989, %v1017
      %v1036 = vsub.f32 %v990, %v1017
      %v1037 = vsub.f32 %v991, %v1017
      %v1038 = vsub.f32 %v992, %v1017
      %v1039 = vsub.f32 %v993, %v1017
      %v1040 = vsub.f32 %v994, %v1017
      %v1041 = vsub.f32 %v995, %v1017
      %v1042 = vsub.f32 %v996, %v1017
      %v1043 = vsub.f32 %v997, %v1017
      %v1044 = vsub.f32 %v998, %v1017
      %v1045 = vsub.f32 %v999, %v1017
      %v1046 = vsub.f32 %v1000, %v1017
      %v1047 = vsub.f32 %v1001, %v1017
      %v1048 = vsub.f32 %v1002, %v1017
      %v1049 = vsub.f32 %v1003, %v1017
      %v1050 = vsub.f32 %v1004, %v1017
      %v1051 = vsub.f32 %v1005, %v1017
      %v1052 = vsub.f32 %v1006, %v1017
      %v1053 = vsub.f32 %v1007, %v1017
      %v1054 = vsub.f32 %v1008, %v1017
      %v1055 = vsub.f32 %v1009, %v1017
      %v1056 = vsub.f32 %v1010, %v1017
      %v1057 = vsub.f32 %v1011, %v1017
      %v1058 = vsub.f32 %v1012, %v1017
      %v1059 = vsub.f32 %v1013, %v1017
      %v1060 = vsub.f32 %v1014, %v1017
      %v1061 = vsub.f32 %v1015, %v1017
      %v1062 = vsub.f32 %v1016, %v1017
      %v1063 = vld [vmem:[%s652] sm:$0xff]
      %v1064 = vld [vmem:[%s652 + $0x8] sm:$0xff]
      %v1065 = vld [vmem:[%s652 + $0x10] sm:$0xff]
      %v1066 = vld [vmem:[%s652 + $0x18] sm:$0xff]
      %v1067 = vld [vmem:[%s652 + $0x20] sm:$0xff]
      %v1068 = vld [vmem:[%s652 + $0x28] sm:$0xff]
      %v1069 = vld [vmem:[%s652 + $0x30] sm:$0xff]
      %v1070 = vld [vmem:[%s652 + $0x38] sm:$0xff]
      %v1071 = vld [vmem:[%s652 + $0x40] sm:$0xff]
      %v1072 = vld [vmem:[%s652 + $0x48] sm:$0xff]
      %v1073 = vld [vmem:[%s652 + $0x50] sm:$0xff]
      %v1074 = vld [vmem:[%s652 + $0x58] sm:$0xff]
      %v1075 = vld [vmem:[%s652 + $0x60] sm:$0xff]
      %v1076 = vld [vmem:[%s652 + $0x68] sm:$0xff]
      %v1077 = vld [vmem:[%s652 + $0x70] sm:$0xff]
      %v1078 = vld [vmem:[%s652 + $0x78] sm:$0xff]
      %v1079 = vld [vmem:[%s652 + $0x80] sm:$0xff]
      %v1080 = vld [vmem:[%s652 + $0x88] sm:$0xff]
      %v1081 = vld [vmem:[%s652 + $0x90] sm:$0xff]
      %v1082 = vld [vmem:[%s652 + $0x98] sm:$0xff]
      %v1083 = vld [vmem:[%s652 + $0xa0] sm:$0xff]
      %v1084 = vld [vmem:[%s652 + $0xa8] sm:$0xff]
      %v1085 = vld [vmem:[%s652 + $0xb0] sm:$0xff]
      %v1086 = vld [vmem:[%s652 + $0xb8] sm:$0xff]
      %v1087 = vld [vmem:[%s652 + $0xc0] sm:$0xff]
      %v1088 = vld [vmem:[%s652 + $0xc8] sm:$0xff]
      %v1089 = vld [vmem:[%s652 + $0xd0] sm:$0xff]
      %v1090 = vld [vmem:[%s652 + $0xd8] sm:$0xff]
      %v1091 = vld [vmem:[%s652 + $0xe0] sm:$0xff]
      %v1092 = vld [vmem:[%s652 + $0xe8] sm:$0xff]
      %v1093 = vld [vmem:[%s652 + $0xf0] sm:$0xff]
      %v1094 = vld [vmem:[%s652 + $0xf8] sm:$0xff]
      %v1095 = vld [vmem:[%s652 + $0x100] sm:$0xff]
      %v1096 = vld [vmem:[%s652 + $0x108] sm:$0xff]
      %v1097 = vld [vmem:[%s652 + $0x110] sm:$0xff]
      %v1098 = vld [vmem:[%s652 + $0x118] sm:$0xff]
      %v1099 = vld [vmem:[%s652 + $0x120] sm:$0xff]
      %v1100 = vld [vmem:[%s652 + $0x128] sm:$0xff]
      %v1101 = vld [vmem:[%s652 + $0x130] sm:$0xff]
      %v1102 = vld [vmem:[%s652 + $0x138] sm:$0xff]
      %v1103 = vld [vmem:[%s652 + $0x140] sm:$0xff]
      %v1104 = vld [vmem:[%s652 + $0x148] sm:$0xff]
      %v1105 = vld [vmem:[%s652 + $0x150] sm:$0xff]
      %v1106 = vld [vmem:[%s652 + $0x158] sm:$0xff]
      %v1107 = vld [vmem:[%s652 + $0x160] sm:$0xff]
      %v1108 = vperm.slane %v970, 0
      %v1109 = vsub.f32 %v1063, %v1108
      %v1110 = vsub.f32 %v1064, %v1108
      %v1111 = vsub.f32 %v1065, %v1108
      %v1112 = vsub.f32 %v1066, %v1108
      %v1113 = vsub.f32 %v1067, %v1108
      %v1114 = vsub.f32 %v1068, %v1108
      %v1115 = vsub.f32 %v1069, %v1108
      %v1116 = vsub.f32 %v1070, %v1108
      %v1117 = vsub.f32 %v1071, %v1108
      %v1118 = vsub.f32 %v1072, %v1108
      %v1119 = vsub.f32 %v1073, %v1108
      %v1120 = vsub.f32 %v1074, %v1108
      %v1121 = vsub.f32 %v1075, %v1108
      %v1122 = vsub.f32 %v1076, %v1108
      %v1123 = vsub.f32 %v1077, %v1108
      %v1124 = vsub.f32 %v1078, %v1108
      %v1125 = vsub.f32 %v1079, %v1108
      %v1126 = vsub.f32 %v1080, %v1108
      %v1127 = vsub.f32 %v1081, %v1108
      %v1128 = vsub.f32 %v1082, %v1108
      %v1129 = vsub.f32 %v1083, %v1108
      %v1130 = vsub.f32 %v1084, %v1108
      %v1131 = vsub.f32 %v1085, %v1108
      %v1132 = vsub.f32 %v1086, %v1108
      %v1133 = vsub.f32 %v1087, %v1108
      %v1134 = vsub.f32 %v1088, %v1108
      %v1135 = vsub.f32 %v1089, %v1108
      %v1136 = vsub.f32 %v1090, %v1108
      %v1137 = vsub.f32 %v1091, %v1108
      %v1138 = vsub.f32 %v1092, %v1108
      %v1139 = vsub.f32 %v1093, %v1108
      %v1140 = vsub.f32 %v1094, %v1108
      %v1141 = vsub.f32 %v1095, %v1108
      %v1142 = vsub.f32 %v1096, %v1108
      %v1143 = vsub.f32 %v1097, %v1108
      %v1144 = vsub.f32 %v1098, %v1108
      %v1145 = vsub.f32 %v1099, %v1108
      %v1146 = vsub.f32 %v1100, %v1108
      %v1147 = vsub.f32 %v1101, %v1108
      %v1148 = vsub.f32 %v1102, %v1108
      %v1149 = vsub.f32 %v1103, %v1108
      %v1150 = vsub.f32 %v1104, %v1108
      %v1151 = vsub.f32 %v1105, %v1108
      %v1152 = vsub.f32 %v1106, %v1108
      %v1153 = vsub.f32 %v1107, %v1108
      %v1154 = vld [vmem:[%s878] sm:$0xff]
      %v1155 = vld [vmem:[%s878 + $0x8] sm:$0xff]
      %v1156 = vld [vmem:[%s878 + $0x10] sm:$0xff]
      %v1157 = vld [vmem:[%s878 + $0x18] sm:$0xff]
      %v1158 = vld [vmem:[%s878 + $0x20] sm:$0xff]
      %v1159 = vld [vmem:[%s878 + $0x28] sm:$0xff]
      %v1160 = vld [vmem:[%s878 + $0x30] sm:$0xff]
      %v1161 = vld [vmem:[%s878 + $0x38] sm:$0xff]
      %v1162 = vld [vmem:[%s878 + $0x40] sm:$0xff]
      %v1163 = vld [vmem:[%s878 + $0x48] sm:$0xff]
      %v1164 = vld [vmem:[%s878 + $0x50] sm:$0xff]
      %v1165 = vld [vmem:[%s878 + $0x58] sm:$0xff]
      %v1166 = vld [vmem:[%s878 + $0x60] sm:$0xff]
      %v1167 = vld [vmem:[%s878 + $0x68] sm:$0xff]
      %v1168 = vld [vmem:[%s878 + $0x70] sm:$0xff]
      %v1169 = vld [vmem:[%s878 + $0x78] sm:$0xff]
      %v1170 = vld [vmem:[%s878 + $0x80] sm:$0xff]
      %v1171 = vld [vmem:[%s878 + $0x88] sm:$0xff]
      %v1172 = vld [vmem:[%s878 + $0x90] sm:$0xff]
      %v1173 = vld [vmem:[%s878 + $0x98] sm:$0xff]
      %v1174 = vld [vmem:[%s878 + $0xa0] sm:$0xff]
      %v1175 = vld [vmem:[%s878 + $0xa8] sm:$0xff]
      %v1176 = vld [vmem:[%s878 + $0xb0] sm:$0xff]
      %v1177 = vld [vmem:[%s878 + $0xb8] sm:$0xff]
      %v1178 = vld [vmem:[%s878 + $0xc0] sm:$0xff]
      %v1179 = vld [vmem:[%s878 + $0xc8] sm:$0xff]
      %v1180 = vld [vmem:[%s878 + $0xd0] sm:$0xff]
      %v1181 = vld [vmem:[%s878 + $0xd8] sm:$0xff]
      %v1182 = vld [vmem:[%s878 + $0xe0] sm:$0xff]
      %v1183 = vld [vmem:[%s878 + $0xe8] sm:$0xff]
      %v1184 = vld [vmem:[%s878 + $0xf0] sm:$0xff]
      %v1185 = vld [vmem:[%s878 + $0xf8] sm:$0xff]
      %v1186 = vld [vmem:[%s878 + $0x100] sm:$0xff]
      %v1187 = vld [vmem:[%s878 + $0x108] sm:$0xff]
      %v1188 = vld [vmem:[%s878 + $0x110] sm:$0xff]
      %v1189 = vld [vmem:[%s878 + $0x118] sm:$0xff]
      %v1190 = vld [vmem:[%s878 + $0x120] sm:$0xff]
      %v1191 = vld [vmem:[%s878 + $0x128] sm:$0xff]
      %v1192 = vld [vmem:[%s878 + $0x130] sm:$0xff]
      %v1193 = vld [vmem:[%s878 + $0x138] sm:$0xff]
      %v1194 = vld [vmem:[%s878 + $0x140] sm:$0xff]
      %v1195 = vld [vmem:[%s878 + $0x148] sm:$0xff]
      %v1196 = vld [vmem:[%s878 + $0x150] sm:$0xff]
      %v1197 = vld [vmem:[%s878 + $0x158] sm:$0xff]
      %v1198 = vld [vmem:[%s878 + $0x160] sm:$0xff]
      %v1199 = vperm.slane %v971, 0
      %v1200 = vsub.f32 %v1154, %v1199
      %v1201 = vsub.f32 %v1155, %v1199
      %v1202 = vsub.f32 %v1156, %v1199
      %v1203 = vsub.f32 %v1157, %v1199
      %v1204 = vsub.f32 %v1158, %v1199
      %v1205 = vsub.f32 %v1159, %v1199
      %v1206 = vsub.f32 %v1160, %v1199
      %v1207 = vsub.f32 %v1161, %v1199
      %v1208 = vsub.f32 %v1162, %v1199
      %v1209 = vsub.f32 %v1163, %v1199
      %v1210 = vsub.f32 %v1164, %v1199
      %v1211 = vsub.f32 %v1165, %v1199
      %v1212 = vsub.f32 %v1166, %v1199
      %v1213 = vsub.f32 %v1167, %v1199
      %v1214 = vsub.f32 %v1168, %v1199
      %v1215 = vsub.f32 %v1169, %v1199
      %v1216 = vsub.f32 %v1170, %v1199
      %v1217 = vsub.f32 %v1171, %v1199
      %v1218 = vsub.f32 %v1172, %v1199
      %v1219 = vsub.f32 %v1173, %v1199
      %v1220 = vsub.f32 %v1174, %v1199
      %v1221 = vsub.f32 %v1175, %v1199
      %v1222 = vsub.f32 %v1176, %v1199
      %v1223 = vsub.f32 %v1177, %v1199
      %v1224 = vsub.f32 %v1178, %v1199
      %v1225 = vsub.f32 %v1179, %v1199
      %v1226 = vsub.f32 %v1180, %v1199
      %v1227 = vsub.f32 %v1181, %v1199
      %v1228 = vsub.f32 %v1182, %v1199
      %v1229 = vsub.f32 %v1183, %v1199
      %v1230 = vsub.f32 %v1184, %v1199
      %v1231 = vsub.f32 %v1185, %v1199
      %v1232 = vsub.f32 %v1186, %v1199
      %v1233 = vsub.f32 %v1187, %v1199
      %v1234 = vsub.f32 %v1188, %v1199
      %v1235 = vsub.f32 %v1189, %v1199
      %v1236 = vsub.f32 %v1190, %v1199
      %v1237 = vsub.f32 %v1191, %v1199
      %v1238 = vsub.f32 %v1192, %v1199
      %v1239 = vsub.f32 %v1193, %v1199
      %v1240 = vsub.f32 %v1194, %v1199
      %v1241 = vsub.f32 %v1195, %v1199
      %v1242 = vsub.f32 %v1196, %v1199
      %v1243 = vsub.f32 %v1197, %v1199
      %v1244 = vsub.f32 %v1198, %v1199
      %v1245 = vmul.f32 %v1018, %v1018
      %v1246 = vmul.f32 %v1019, %v1019
      %v1247 = vmul.f32 %v1020, %v1020
      %v1248 = vmul.f32 %v1021, %v1021
      %v1249 = vmul.f32 %v1022, %v1022
      %v1250 = vmul.f32 %v1023, %v1023
      %v1251 = vmul.f32 %v1024, %v1024
      %v1252 = vmul.f32 %v1025, %v1025
      %v1253 = vmul.f32 %v1026, %v1026
      %v1254 = vmul.f32 %v1027, %v1027
      %v1255 = vmul.f32 %v1028, %v1028
      %v1256 = vmul.f32 %v1029, %v1029
      %v1257 = vmul.f32 %v1030, %v1030
      %v1258 = vmul.f32 %v1031, %v1031
      %v1259 = vmul.f32 %v1032, %v1032
      %v1260 = vmul.f32 %v1033, %v1033
      %v1261 = vmul.f32 %v1034, %v1034
      %v1262 = vmul.f32 %v1035, %v1035
      %v1263 = vmul.f32 %v1036, %v1036
      %v1264 = vmul.f32 %v1037, %v1037
      %v1265 = vmul.f32 %v1038, %v1038
      %v1266 = vmul.f32 %v1039, %v1039
      %v1267 = vmul.f32 %v1040, %v1040
      %v1268 = vmul.f32 %v1041, %v1041
      %v1269 = vmul.f32 %v1042, %v1042
      %v1270 = vmul.f32 %v1043, %v1043
      %v1271 = vmul.f32 %v1044, %v1044
      %v1272 = vmul.f32 %v1045, %v1045
      %v1273 = vmul.f32 %v1046, %v1046
      %v1274 = vmul.f32 %v1047, %v1047
      %v1275 = vmul.f32 %v1048, %v1048
      %v1276 = vmul.f32 %v1049, %v1049
      %v1277 = vmul.f32 %v1050, %v1050
      %v1278 = vmul.f32 %v1051, %v1051
      %v1279 = vmul.f32 %v1052, %v1052
      %v1280 = vmul.f32 %v1053, %v1053
      %v1281 = vmul.f32 %v1054, %v1054
      %v1282 = vmul.f32 %v1055, %v1055
      %v1283 = vmul.f32 %v1056, %v1056
      %v1284 = vmul.f32 %v1057, %v1057
      %v1285 = vmul.f32 %v1058, %v1058
      %v1286 = vmul.f32 %v1059, %v1059
      %v1287 = vmul.f32 %v1060, %v1060
      %v1288 = vmul.f32 %v1061, %v1061
      %v1289 = vmul.f32 %v1062, %v1062
      %v1290 = vmul.f32 %v1109, %v1109
      %v1291 = vmul.f32 %v1110, %v1110
      %v1292 = vmul.f32 %v1111, %v1111
      %v1293 = vmul.f32 %v1112, %v1112
      %v1294 = vmul.f32 %v1113, %v1113
      %v1295 = vmul.f32 %v1114, %v1114
      %v1296 = vmul.f32 %v1115, %v1115
      %v1297 = vmul.f32 %v1116, %v1116
      %v1298 = vmul.f32 %v1117, %v1117
      %v1299 = vmul.f32 %v1118, %v1118
      %v1300 = vmul.f32 %v1119, %v1119
      %v1301 = vmul.f32 %v1120, %v1120
      %v1302 = vmul.f32 %v1121, %v1121
      %v1303 = vmul.f32 %v1122, %v1122
      %v1304 = vmul.f32 %v1123, %v1123
      %v1305 = vmul.f32 %v1124, %v1124
      %v1306 = vmul.f32 %v1125, %v1125
      %v1307 = vmul.f32 %v1126, %v1126
      %v1308 = vmul.f32 %v1127, %v1127
      %v1309 = vmul.f32 %v1128, %v1128
      %v1310 = vmul.f32 %v1129, %v1129
      %v1311 = vmul.f32 %v1130, %v1130
      %v1312 = vmul.f32 %v1131, %v1131
      %v1313 = vmul.f32 %v1132, %v1132
      %v1314 = vmul.f32 %v1133, %v1133
      %v1315 = vmul.f32 %v1134, %v1134
      %v1316 = vmul.f32 %v1135, %v1135
      %v1317 = vmul.f32 %v1136, %v1136
      %v1318 = vmul.f32 %v1137, %v1137
      %v1319 = vmul.f32 %v1138, %v1138
      %v1320 = vmul.f32 %v1139, %v1139
      %v1321 = vmul.f32 %v1140, %v1140
      %v1322 = vmul.f32 %v1141, %v1141
      %v1323 = vmul.f32 %v1142, %v1142
      %v1324 = vmul.f32 %v1143, %v1143
      %v1325 = vmul.f32 %v1144, %v1144
      %v1326 = vmul.f32 %v1145, %v1145
      %v1327 = vmul.f32 %v1146, %v1146
      %v1328 = vmul.f32 %v1147, %v1147
      %v1329 = vmul.f32 %v1148, %v1148
      %v1330 = vmul.f32 %v1149, %v1149
      %v1331 = vmul.f32 %v1150, %v1150
      %v1332 = vmul.f32 %v1151, %v1151
      %v1333 = vmul.f32 %v1152, %v1152
      %v1334 = vmul.f32 %v1153, %v1153
      %v1335 = vadd.f32 %v1245, %v1290
      %v1336 = vadd.f32 %v1246, %v1291
      %v1337 = vadd.f32 %v1247, %v1292
      %v1338 = vadd.f32 %v1248, %v1293
      %v1339 = vadd.f32 %v1249, %v1294
      %v1340 = vadd.f32 %v1250, %v1295
      %v1341 = vadd.f32 %v1251, %v1296
      %v1342 = vadd.f32 %v1252, %v1297
      %v1343 = vadd.f32 %v1253, %v1298
      %v1344 = vadd.f32 %v1254, %v1299
      %v1345 = vadd.f32 %v1255, %v1300
      %v1346 = vadd.f32 %v1256, %v1301
      %v1347 = vadd.f32 %v1257, %v1302
      %v1348 = vadd.f32 %v1258, %v1303
      %v1349 = vadd.f32 %v1259, %v1304
      %v1350 = vadd.f32 %v1260, %v1305
      %v1351 = vadd.f32 %v1261, %v1306
      %v1352 = vadd.f32 %v1262, %v1307
      %v1353 = vadd.f32 %v1263, %v1308
      %v1354 = vadd.f32 %v1264, %v1309
      %v1355 = vadd.f32 %v1265, %v1310
      %v1356 = vadd.f32 %v1266, %v1311
      %v1357 = vadd.f32 %v1267, %v1312
      %v1358 = vadd.f32 %v1268, %v1313
      %v1359 = vadd.f32 %v1269, %v1314
      %v1360 = vadd.f32 %v1270, %v1315
      %v1361 = vadd.f32 %v1271, %v1316
      %v1362 = vadd.f32 %v1272, %v1317
      %v1363 = vadd.f32 %v1273, %v1318
      %v1364 = vadd.f32 %v1274, %v1319
      %v1365 = vadd.f32 %v1275, %v1320
      %v1366 = vadd.f32 %v1276, %v1321
      %v1367 = vadd.f32 %v1277, %v1322
      %v1368 = vadd.f32 %v1278, %v1323
      %v1369 = vadd.f32 %v1279, %v1324
      %v1370 = vadd.f32 %v1280, %v1325
      %v1371 = vadd.f32 %v1281, %v1326
      %v1372 = vadd.f32 %v1282, %v1327
      %v1373 = vadd.f32 %v1283, %v1328
      %v1374 = vadd.f32 %v1284, %v1329
      %v1375 = vadd.f32 %v1285, %v1330
      %v1376 = vadd.f32 %v1286, %v1331
      %v1377 = vadd.f32 %v1287, %v1332
      %v1378 = vadd.f32 %v1288, %v1333
      %v1379 = vadd.f32 %v1289, %v1334
      %v1380 = vmul.f32 %v1200, %v1200
      %v1381 = vmul.f32 %v1201, %v1201
      %v1382 = vmul.f32 %v1202, %v1202
      %v1383 = vmul.f32 %v1203, %v1203
      %v1384 = vmul.f32 %v1204, %v1204
      %v1385 = vmul.f32 %v1205, %v1205
      %v1386 = vmul.f32 %v1206, %v1206
      %v1387 = vmul.f32 %v1207, %v1207
      %v1388 = vmul.f32 %v1208, %v1208
      %v1389 = vmul.f32 %v1209, %v1209
      %v1390 = vmul.f32 %v1210, %v1210
      %v1391 = vmul.f32 %v1211, %v1211
      %v1392 = vmul.f32 %v1212, %v1212
      %v1393 = vmul.f32 %v1213, %v1213
      %v1394 = vmul.f32 %v1214, %v1214
      %v1395 = vmul.f32 %v1215, %v1215
      %v1396 = vmul.f32 %v1216, %v1216
      %v1397 = vmul.f32 %v1217, %v1217
      %v1398 = vmul.f32 %v1218, %v1218
      %v1399 = vmul.f32 %v1219, %v1219
      %v1400 = vmul.f32 %v1220, %v1220
      %v1401 = vmul.f32 %v1221, %v1221
      %v1402 = vmul.f32 %v1222, %v1222
      %v1403 = vmul.f32 %v1223, %v1223
      %v1404 = vmul.f32 %v1224, %v1224
      %v1405 = vmul.f32 %v1225, %v1225
      %v1406 = vmul.f32 %v1226, %v1226
      %v1407 = vmul.f32 %v1227, %v1227
      %v1408 = vmul.f32 %v1228, %v1228
      %v1409 = vmul.f32 %v1229, %v1229
      %v1410 = vmul.f32 %v1230, %v1230
      %v1411 = vmul.f32 %v1231, %v1231
      %v1412 = vmul.f32 %v1232, %v1232
      %v1413 = vmul.f32 %v1233, %v1233
      %v1414 = vmul.f32 %v1234, %v1234
      %v1415 = vmul.f32 %v1235, %v1235
      %v1416 = vmul.f32 %v1236, %v1236
      %v1417 = vmul.f32 %v1237, %v1237
      %v1418 = vmul.f32 %v1238, %v1238
      %v1419 = vmul.f32 %v1239, %v1239
      %v1420 = vmul.f32 %v1240, %v1240
      %v1421 = vmul.f32 %v1241, %v1241
      %v1422 = vmul.f32 %v1242, %v1242
      %v1423 = vmul.f32 %v1243, %v1243
      %v1424 = vmul.f32 %v1244, %v1244
      %v1425 = vadd.f32 %v1335, %v1380
      %v1426 = vadd.f32 %v1336, %v1381
      %v1427 = vadd.f32 %v1337, %v1382
      %v1428 = vadd.f32 %v1338, %v1383
      %v1429 = vadd.f32 %v1339, %v1384
      %v1430 = vadd.f32 %v1340, %v1385
      %v1431 = vadd.f32 %v1341, %v1386
      %v1432 = vadd.f32 %v1342, %v1387
      %v1433 = vadd.f32 %v1343, %v1388
      %v1434 = vadd.f32 %v1344, %v1389
      %v1435 = vadd.f32 %v1345, %v1390
      %v1436 = vadd.f32 %v1346, %v1391
      %v1437 = vadd.f32 %v1347, %v1392
      %v1438 = vadd.f32 %v1348, %v1393
      %v1439 = vadd.f32 %v1349, %v1394
      %v1440 = vadd.f32 %v1350, %v1395
      %v1441 = vadd.f32 %v1351, %v1396
      %v1442 = vadd.f32 %v1352, %v1397
      %v1443 = vadd.f32 %v1353, %v1398
      %v1444 = vadd.f32 %v1354, %v1399
      %v1445 = vadd.f32 %v1355, %v1400
      %v1446 = vadd.f32 %v1356, %v1401
      %v1447 = vadd.f32 %v1357, %v1402
      %v1448 = vadd.f32 %v1358, %v1403
      %v1449 = vadd.f32 %v1359, %v1404
      %v1450 = vadd.f32 %v1360, %v1405
      %v1451 = vadd.f32 %v1361, %v1406
      %v1452 = vadd.f32 %v1362, %v1407
      %v1453 = vadd.f32 %v1363, %v1408
      %v1454 = vadd.f32 %v1364, %v1409
      %v1455 = vadd.f32 %v1365, %v1410
      %v1456 = vadd.f32 %v1366, %v1411
      %v1457 = vadd.f32 %v1367, %v1412
      %v1458 = vadd.f32 %v1368, %v1413
      %v1459 = vadd.f32 %v1369, %v1414
      %v1460 = vadd.f32 %v1370, %v1415
      %v1461 = vadd.f32 %v1371, %v1416
      %v1462 = vadd.f32 %v1372, %v1417
      %v1463 = vadd.f32 %v1373, %v1418
      %v1464 = vadd.f32 %v1374, %v1419
      %v1465 = vadd.f32 %v1375, %v1420
      %v1466 = vadd.f32 %v1376, %v1421
      %v1467 = vadd.f32 %v1377, %v1422
      %v1468 = vadd.f32 %v1378, %v1423
      %v1469 = vadd.f32 %v1379, %v1424
      %v1470 = vld [vmem:[#allocation3] sm:$0xff]
      %v1471 = vld [vmem:[#allocation3 + $0x8] sm:$0xff]
      %v1472 = vld [vmem:[#allocation3 + $0x10] sm:$0xff]
      %v1473 = vld [vmem:[#allocation3 + $0x18] sm:$0xff]
      %v1474 = vld [vmem:[#allocation3 + $0x20] sm:$0xff]
      %v1475 = vld [vmem:[#allocation3 + $0x28] sm:$0xff]
      %v1476 = vld [vmem:[#allocation3 + $0x30] sm:$0xff]
      %v1477 = vld [vmem:[#allocation3 + $0x38] sm:$0xff]
      %v1478 = vld [vmem:[#allocation3 + $0x40] sm:$0xff]
      %v1479 = vld [vmem:[#allocation3 + $0x48] sm:$0xff]
      %v1480 = vld [vmem:[#allocation3 + $0x50] sm:$0xff]
      %v1481 = vld [vmem:[#allocation3 + $0x58] sm:$0xff]
      %v1482 = vld [vmem:[#allocation3 + $0x60] sm:$0xff]
      %v1483 = vld [vmem:[#allocation3 + $0x68] sm:$0xff]
      %v1484 = vld [vmem:[#allocation3 + $0x70] sm:$0xff]
      %v1485 = vld [vmem:[#allocation3 + $0x78] sm:$0xff]
      %v1486 = vld [vmem:[#allocation3 + $0x80] sm:$0xff]
      %v1487 = vld [vmem:[#allocation3 + $0x88] sm:$0xff]
      %v1488 = vld [vmem:[#allocation3 + $0x90] sm:$0xff]
      %v1489 = vld [vmem:[#allocation3 + $0x98] sm:$0xff]
      %v1490 = vld [vmem:[#allocation3 + $0xa0] sm:$0xff]
      %v1491 = vld [vmem:[#allocation3 + $0xa8] sm:$0xff]
      %v1492 = vld [vmem:[#allocation3 + $0xb0] sm:$0xff]
      %v1493 = vld [vmem:[#allocation3 + $0xb8] sm:$0xff]
      %v1494 = vld [vmem:[#allocation3 + $0xc0] sm:$0xff]
      %v1495 = vld [vmem:[#allocation3 + $0xc8] sm:$0xff]
      %v1496 = vld [vmem:[#allocation3 + $0xd0] sm:$0xff]
      %v1497 = vld [vmem:[#allocation3 + $0xd8] sm:$0xff]
      %v1498 = vld [vmem:[#allocation3 + $0xe0] sm:$0xff]
      %v1499 = vld [vmem:[#allocation3 + $0xe8] sm:$0xff]
      %v1500 = vld [vmem:[#allocation3 + $0xf0] sm:$0xff]
      %v1501 = vld [vmem:[#allocation3 + $0xf8] sm:$0xff]
      %v1502 = vld [vmem:[#allocation3 + $0x100] sm:$0xff]
      %v1503 = vld [vmem:[#allocation3 + $0x108] sm:$0xff]
      %v1504 = vld [vmem:[#allocation3 + $0x110] sm:$0xff]
      %v1505 = vld [vmem:[#allocation3 + $0x118] sm:$0xff]
      %v1506 = vld [vmem:[#allocation3 + $0x120] sm:$0xff]
      %v1507 = vld [vmem:[#allocation3 + $0x128] sm:$0xff]
      %v1508 = vld [vmem:[#allocation3 + $0x130] sm:$0xff]
      %v1509 = vld [vmem:[#allocation3 + $0x138] sm:$0xff]
      %v1510 = vld [vmem:[#allocation3 + $0x140] sm:$0xff]
      %v1511 = vld [vmem:[#allocation3 + $0x148] sm:$0xff]
      %v1512 = vld [vmem:[#allocation3 + $0x150] sm:$0xff]
      %v1513 = vld [vmem:[#allocation3 + $0x158] sm:$0xff]
      %v1514 = vld [vmem:[#allocation3 + $0x160] sm:$0xff]
      %v1515 = vmin.f32 %v1470, %v1425
      %v1516 = vmin.f32 %v1471, %v1426
      %v1517 = vmin.f32 %v1472, %v1427
      %v1518 = vmin.f32 %v1473, %v1428
      %v1519 = vmin.f32 %v1474, %v1429
      %v1520 = vmin.f32 %v1475, %v1430
      %v1521 = vmin.f32 %v1476, %v1431
      %v1522 = vmin.f32 %v1477, %v1432
      %v1523 = vmin.f32 %v1478, %v1433
      %v1524 = vmin.f32 %v1479, %v1434
      %v1525 = vmin.f32 %v1480, %v1435
      %v1526 = vmin.f32 %v1481, %v1436
      %v1527 = vmin.f32 %v1482, %v1437
      %v1528 = vmin.f32 %v1483, %v1438
      %v1529 = vmin.f32 %v1484, %v1439
      %v1530 = vmin.f32 %v1485, %v1440
      %v1531 = vmin.f32 %v1486, %v1441
      %v1532 = vmin.f32 %v1487, %v1442
      %v1533 = vmin.f32 %v1488, %v1443
      %v1534 = vmin.f32 %v1489, %v1444
      %v1535 = vmin.f32 %v1490, %v1445
      %v1536 = vmin.f32 %v1491, %v1446
      %v1537 = vmin.f32 %v1492, %v1447
      %v1538 = vmin.f32 %v1493, %v1448
      %v1539 = vmin.f32 %v1494, %v1449
      %v1540 = vmin.f32 %v1495, %v1450
      %v1541 = vmin.f32 %v1496, %v1451
      %v1542 = vmin.f32 %v1497, %v1452
      %v1543 = vmin.f32 %v1498, %v1453
      %v1544 = vmin.f32 %v1499, %v1454
      %v1545 = vmin.f32 %v1500, %v1455
      %v1546 = vmin.f32 %v1501, %v1456
      %v1547 = vmin.f32 %v1502, %v1457
      %v1548 = vmin.f32 %v1503, %v1458
      %v1549 = vmin.f32 %v1504, %v1459
      %v1550 = vmin.f32 %v1505, %v1460
      %v1551 = vmin.f32 %v1506, %v1461
      %v1552 = vmin.f32 %v1507, %v1462
      %v1553 = vmin.f32 %v1508, %v1463
      %v1554 = vmin.f32 %v1509, %v1464
      %v1555 = vmin.f32 %v1510, %v1465
      %v1556 = vmin.f32 %v1511, %v1466
      %v1557 = vmin.f32 %v1512, %v1467
      %v1558 = vmin.f32 %v1513, %v1468
      %v1559 = vmin.f32 %v1514, %v1469
      %1560 = vst [vmem:[#allocation3] sm:$0xff] %v1515
      %1561 = vst [vmem:[#allocation3 + $0x8] sm:$0xff] %v1516
      %1562 = vst [vmem:[#allocation3 + $0x10] sm:$0xff] %v1517
      %1563 = vst [vmem:[#allocation3 + $0x18] sm:$0xff] %v1518
      %1564 = vst [vmem:[#allocation3 + $0x20] sm:$0xff] %v1519
      %1565 = vst [vmem:[#allocation3 + $0x28] sm:$0xff] %v1520
      %1566 = vst [vmem:[#allocation3 + $0x30] sm:$0xff] %v1521
      %1567 = vst [vmem:[#allocation3 + $0x38] sm:$0xff] %v1522
      %1568 = vst [vmem:[#allocation3 + $0x40] sm:$0xff] %v1523
      %1569 = vst [vmem:[#allocation3 + $0x48] sm:$0xff] %v1524
      %1570 = vst [vmem:[#allocation3 + $0x50] sm:$0xff] %v1525
      %1571 = vst [vmem:[#allocation3 + $0x58] sm:$0xff] %v1526
      %1572 = vst [vmem:[#allocation3 + $0x60] sm:$0xff] %v1527
      %1573 = vst [vmem:[#allocation3 + $0x68] sm:$0xff] %v1528
      %1574 = vst [vmem:[#allocation3 + $0x70] sm:$0xff] %v1529
      %1575 = vst [vmem:[#allocation3 + $0x78] sm:$0xff] %v1530
      %1576 = vst [vmem:[#allocation3 + $0x80] sm:$0xff] %v1531
      %1577 = vst [vmem:[#allocation3 + $0x88] sm:$0xff] %v1532
      %1578 = vst [vmem:[#allocation3 + $0x90] sm:$0xff] %v1533
      %1579 = vst [vmem:[#allocation3 + $0x98] sm:$0xff] %v1534
      %1580 = vst [vmem:[#allocation3 + $0xa0] sm:$0xff] %v1535
      %1581 = vst [vmem:[#allocation3 + $0xa8] sm:$0xff] %v1536
      %1582 = vst [vmem:[#allocation3 + $0xb0] sm:$0xff] %v1537
      %1583 = vst [vmem:[#allocation3 + $0xb8] sm:$0xff] %v1538
      %1584 = vst [vmem:[#allocation3 + $0xc0] sm:$0xff] %v1539
      %1585 = vst [vmem:[#allocation3 + $0xc8] sm:$0xff] %v1540
      %1586 = vst [vmem:[#allocation3 + $0xd0] sm:$0xff] %v1541
      %1587 = vst [vmem:[#allocation3 + $0xd8] sm:$0xff] %v1542
      %1588 = vst [vmem:[#allocation3 + $0xe0] sm:$0xff] %v1543
      %1589 = vst [vmem:[#allocation3 + $0xe8] sm:$0xff] %v1544
      %1590 = vst [vmem:[#allocation3 + $0xf0] sm:$0xff] %v1545
      %1591 = vst [vmem:[#allocation3 + $0xf8] sm:$0xff] %v1546
      %1592 = vst [vmem:[#allocation3 + $0x100] sm:$0xff] %v1547
      %1593 = vst [vmem:[#allocation3 + $0x108] sm:$0xff] %v1548
      %1594 = vst [vmem:[#allocation3 + $0x110] sm:$0xff] %v1549
      %1595 = vst [vmem:[#allocation3 + $0x118] sm:$0xff] %v1550
      %1596 = vst [vmem:[#allocation3 + $0x120] sm:$0xff] %v1551
      %1597 = vst [vmem:[#allocation3 + $0x128] sm:$0xff] %v1552
      %1598 = vst [vmem:[#allocation3 + $0x130] sm:$0xff] %v1553
      %1599 = vst [vmem:[#allocation3 + $0x138] sm:$0xff] %v1554
      %1600 = vst [vmem:[#allocation3 + $0x140] sm:$0xff] %v1555
      %1601 = vst [vmem:[#allocation3 + $0x148] sm:$0xff] %v1556
      %1602 = vst [vmem:[#allocation3 + $0x150] sm:$0xff] %v1557
      %1603 = vst [vmem:[#allocation3 + $0x158] sm:$0xff] %v1558
      %1604 = vst [vmem:[#allocation3 + $0x160] sm:$0xff] %v1559
      %v1605 = vld [vmem:[#allocation3] sm:$0xff]
      %v1606 = vld [vmem:[#allocation3 + $0x8] sm:$0xff]
      %v1607 = vld [vmem:[#allocation3 + $0x10] sm:$0xff]
      %v1608 = vld [vmem:[#allocation3 + $0x18] sm:$0xff]
      %v1609 = vld [vmem:[#allocation3 + $0x20] sm:$0xff]
      %v1610 = vld [vmem:[#allocation3 + $0x28] sm:$0xff]
      %v1611 = vld [vmem:[#allocation3 + $0x30] sm:$0xff]
      %v1612 = vld [vmem:[#allocation3 + $0x38] sm:$0xff]
      %v1613 = vld [vmem:[#allocation3 + $0x40] sm:$0xff]
      %v1614 = vld [vmem:[#allocation3 + $0x48] sm:$0xff]
      %v1615 = vld [vmem:[#allocation3 + $0x50] sm:$0xff]
      %v1616 = vld [vmem:[#allocation3 + $0x58] sm:$0xff]
      %v1617 = vld [vmem:[#allocation3 + $0x60] sm:$0xff]
      %v1618 = vld [vmem:[#allocation3 + $0x68] sm:$0xff]
      %v1619 = vld [vmem:[#allocation3 + $0x70] sm:$0xff]
      %v1620 = vld [vmem:[#allocation3 + $0x78] sm:$0xff]
      %v1621 = vld [vmem:[#allocation3 + $0x80] sm:$0xff]
      %v1622 = vld [vmem:[#allocation3 + $0x88] sm:$0xff]
      %v1623 = vld [vmem:[#allocation3 + $0x90] sm:$0xff]
      %v1624 = vld [vmem:[#allocation3 + $0x98] sm:$0xff]
      %v1625 = vld [vmem:[#allocation3 + $0xa0] sm:$0xff]
      %v1626 = vld [vmem:[#allocation3 + $0xa8] sm:$0xff]
      %v1627 = vld [vmem:[#allocation3 + $0xb0] sm:$0xff]
      %v1628 = vld [vmem:[#allocation3 + $0xb8] sm:$0xff]
      %v1629 = vld [vmem:[#allocation3 + $0xc0] sm:$0xff]
      %v1630 = vld [vmem:[#allocation3 + $0xc8] sm:$0xff]
      %v1631 = vld [vmem:[#allocation3 + $0xd0] sm:$0xff]
      %v1632 = vld [vmem:[#allocation3 + $0xd8] sm:$0xff]
      %v1633 = vld [vmem:[#allocation3 + $0xe0] sm:$0xff]
      %v1634 = vld [vmem:[#allocation3 + $0xe8] sm:$0xff]
      %v1635 = vld [vmem:[#allocation3 + $0xf0] sm:$0xff]
      %v1636 = vld [vmem:[#allocation3 + $0xf8] sm:$0xff]
      %v1637 = vld [vmem:[#allocation3 + $0x100] sm:$0xff]
      %v1638 = vld [vmem:[#allocation3 + $0x108] sm:$0xff]
      %v1639 = vld [vmem:[#allocation3 + $0x110] sm:$0xff]
      %v1640 = vld [vmem:[#allocation3 + $0x118] sm:$0xff]
      %v1641 = vld [vmem:[#allocation3 + $0x120] sm:$0xff]
      %v1642 = vld [vmem:[#allocation3 + $0x128] sm:$0xff]
      %v1643 = vld [vmem:[#allocation3 + $0x130] sm:$0xff]
      %v1644 = vld [vmem:[#allocation3 + $0x138] sm:$0xff]
      %v1645 = vld [vmem:[#allocation3 + $0x140] sm:$0xff]
      %v1646 = vld [vmem:[#allocation3 + $0x148] sm:$0xff]
      %v1647 = vld [vmem:[#allocation3 + $0x150] sm:$0xff]
      %v1648 = vld [vmem:[#allocation3 + $0x158] sm:$0xff]
      %v1649 = vld [vmem:[#allocation3 + $0x160] sm:$0xff]
      %1650 = vmin.xlane.f32.xlu0 %v1605
      %v1651 = vpop.xlane.xlu0 %1650
      %1652 = vmin.xlane.f32.xlu0 %v1606
      %v1653 = vpop.xlane.xlu0 %1652
      %1654 = vmin.xlane.f32.xlu0 %v1607
      %v1655 = vpop.xlane.xlu0 %1654
      %1656 = vmin.xlane.f32.xlu0 %v1608
      %v1657 = vpop.xlane.xlu0 %1656
      %1658 = vmin.xlane.f32.xlu0 %v1609
      %v1659 = vpop.xlane.xlu0 %1658
      %1660 = vmin.xlane.f32.xlu0 %v1610
      %v1661 = vpop.xlane.xlu0 %1660
      %1662 = vmin.xlane.f32.xlu0 %v1611
      %v1663 = vpop.xlane.xlu0 %1662
      %1664 = vmin.xlane.f32.xlu0 %v1612
      %v1665 = vpop.xlane.xlu0 %1664
      %1666 = vmin.xlane.f32.xlu0 %v1613
      %v1667 = vpop.xlane.xlu0 %1666
      %1668 = vmin.xlane.f32.xlu0 %v1614
      %v1669 = vpop.xlane.xlu0 %1668
      %1670 = vmin.xlane.f32.xlu0 %v1615
      %v1671 = vpop.xlane.xlu0 %1670
      %1672 = vmin.xlane.f32.xlu0 %v1616
      %v1673 = vpop.xlane.xlu0 %1672
      %1674 = vmin.xlane.f32.xlu0 %v1617
      %v1675 = vpop.xlane.xlu0 %1674
      %1676 = vmin.xlane.f32.xlu0 %v1618
      %v1677 = vpop.xlane.xlu0 %1676
      %1678 = vmin.xlane.f32.xlu0 %v1619
      %v1679 = vpop.xlane.xlu0 %1678
      %1680 = vmin.xlane.f32.xlu0 %v1620
      %v1681 = vpop.xlane.xlu0 %1680
      %1682 = vmin.xlane.f32.xlu0 %v1621
      %v1683 = vpop.xlane.xlu0 %1682
      %1684 = vmin.xlane.f32.xlu0 %v1622
      %v1685 = vpop.xlane.xlu0 %1684
      %1686 = vmin.xlane.f32.xlu0 %v1623
      %v1687 = vpop.xlane.xlu0 %1686
      %1688 = vmin.xlane.f32.xlu0 %v1624
      %v1689 = vpop.xlane.xlu0 %1688
      %1690 = vmin.xlane.f32.xlu0 %v1625
      %v1691 = vpop.xlane.xlu0 %1690
      %1692 = vmin.xlane.f32.xlu0 %v1626
      %v1693 = vpop.xlane.xlu0 %1692
      %1694 = vmin.xlane.f32.xlu0 %v1627
      %v1695 = vpop.xlane.xlu0 %1694
      %1696 = vmin.xlane.f32.xlu0 %v1628
      %v1697 = vpop.xlane.xlu0 %1696
      %1698 = vmin.xlane.f32.xlu0 %v1629
      %v1699 = vpop.xlane.xlu0 %1698
      %1700 = vmin.xlane.f32.xlu0 %v1630
      %v1701 = vpop.xlane.xlu0 %1700
      %1702 = vmin.xlane.f32.xlu0 %v1631
      %v1703 = vpop.xlane.xlu0 %1702
      %1704 = vmin.xlane.f32.xlu0 %v1632
      %v1705 = vpop.xlane.xlu0 %1704
      %1706 = vmin.xlane.f32.xlu0 %v1633
      %v1707 = vpop.xlane.xlu0 %1706
      %1708 = vmin.xlane.f32.xlu0 %v1634
      %v1709 = vpop.xlane.xlu0 %1708
      %1710 = vmin.xlane.f32.xlu0 %v1635
      %v1711 = vpop.xlane.xlu0 %1710
      %1712 = vmin.xlane.f32.xlu0 %v1636
      %v1713 = vpop.xlane.xlu0 %1712
      %1714 = vmin.xlane.f32.xlu0 %v1637
      %v1715 = vpop.xlane.xlu0 %1714
      %1716 = vmin.xlane.f32.xlu0 %v1638
      %v1717 = vpop.xlane.xlu0 %1716
      %1718 = vmin.xlane.f32.xlu0 %v1639
      %v1719 = vpop.xlane.xlu0 %1718
      %1720 = vmin.xlane.f32.xlu0 %v1640
      %v1721 = vpop.xlane.xlu0 %1720
      %1722 = vmin.xlane.f32.xlu0 %v1641
      %v1723 = vpop.xlane.xlu0 %1722
      %1724 = vmin.xlane.f32.xlu0 %v1642
      %v1725 = vpop.xlane.xlu0 %1724
      %1726 = vmin.xlane.f32.xlu0 %v1643
      %v1727 = vpop.xlane.xlu0 %1726
      %1728 = vmin.xlane.f32.xlu0 %v1644
      %v1729 = vpop.xlane.xlu0 %1728
      %1730 = vmin.xlane.f32.xlu0 %v1645
      %v1731 = vpop.xlane.xlu0 %1730
      %1732 = vmin.xlane.f32.xlu0 %v1646
      %v1733 = vpop.xlane.xlu0 %1732
      %1734 = vmin.xlane.f32.xlu0 %v1647
      %v1735 = vpop.xlane.xlu0 %1734
      %1736 = vmin.xlane.f32.xlu0 %v1648
      %v1737 = vpop.xlane.xlu0 %1736
      %1738 = vmin.xlane.f32.xlu0 %v1649
      %v1739 = vpop.xlane.xlu0 %1738
      %v1740 = vrsqrt.pop %v1651
      %v1741 = vmul.f32 %v1740, %v1651
      %v1742 = vmul.f32 %v1741, %v1740
      %v1743 = vmul.f32 0.5, %v1742
      %v1744 = vsub.f32 1.5, %v1743
      %v1745 = vmul.f32 %v1740, %v1744
      %v1746 = vmul.f32 %v1651, %v1745
      %vm1747 = vcmp.eq.f32.partialorder %v1651, inf
      %v1748 = vsel %vm1747, %v1651, %v1746
      %vm1749 = vcmp.eq.f32.partialorder %v1651, 0.0
      %v1750 = vand.u32 %v1651, 2147483648
      %v1751 = vsel %vm1749, %v1750, %v1748
      %v1752 = vrsqrt.pop %v1653
      %v1753 = vmul.f32 %v1752, %v1653
      %v1754 = vmul.f32 %v1753, %v1752
      %v1755 = vmul.f32 0.5, %v1754
      %v1756 = vsub.f32 1.5, %v1755
      %v1757 = vmul.f32 %v1752, %v1756
      %v1758 = vmul.f32 %v1653, %v1757
      %vm1759 = vcmp.eq.f32.partialorder %v1653, inf
      %v1760 = vsel %vm1759, %v1653, %v1758
      %vm1761 = vcmp.eq.f32.partialorder %v1653, 0.0
      %v1762 = vand.u32 %v1653, 2147483648
      %v1763 = vsel %vm1761, %v1762, %v1760
      %v1764 = vrsqrt.pop %v1655
      %v1765 = vmul.f32 %v1764, %v1655
      %v1766 = vmul.f32 %v1765, %v1764
      %v1767 = vmul.f32 0.5, %v1766
      %v1768 = vsub.f32 1.5, %v1767
      %v1769 = vmul.f32 %v1764, %v1768
      %v1770 = vmul.f32 %v1655, %v1769
      %vm1771 = vcmp.eq.f32.partialorder %v1655, inf
      %v1772 = vsel %vm1771, %v1655, %v1770
      %vm1773 = vcmp.eq.f32.partialorder %v1655, 0.0
      %v1774 = vand.u32 %v1655, 2147483648
      %v1775 = vsel %vm1773, %v1774, %v1772
      %v1776 = vrsqrt.pop %v1657
      %v1777 = vmul.f32 %v1776, %v1657
      %v1778 = vmul.f32 %v1777, %v1776
      %v1779 = vmul.f32 0.5, %v1778
      %v1780 = vsub.f32 1.5, %v1779
      %v1781 = vmul.f32 %v1776, %v1780
      %v1782 = vmul.f32 %v1657, %v1781
      %vm1783 = vcmp.eq.f32.partialorder %v1657, inf
      %v1784 = vsel %vm1783, %v1657, %v1782
      %vm1785 = vcmp.eq.f32.partialorder %v1657, 0.0
      %v1786 = vand.u32 %v1657, 2147483648
      %v1787 = vsel %vm1785, %v1786, %v1784
      %v1788 = vrsqrt.pop %v1659
      %v1789 = vmul.f32 %v1788, %v1659
      %v1790 = vmul.f32 %v1789, %v1788
      %v1791 = vmul.f32 0.5, %v1790
      %v1792 = vsub.f32 1.5, %v1791
      %v1793 = vmul.f32 %v1788, %v1792
      %v1794 = vmul.f32 %v1659, %v1793
      %vm1795 = vcmp.eq.f32.partialorder %v1659, inf
      %v1796 = vsel %vm1795, %v1659, %v1794
      %vm1797 = vcmp.eq.f32.partialorder %v1659, 0.0
      %v1798 = vand.u32 %v1659, 2147483648
      %v1799 = vsel %vm1797, %v1798, %v1796
      %v1800 = vrsqrt.pop %v1661
      %v1801 = vmul.f32 %v1800, %v1661
      %v1802 = vmul.f32 %v1801, %v1800
      %v1803 = vmul.f32 0.5, %v1802
      %v1804 = vsub.f32 1.5, %v1803
      %v1805 = vmul.f32 %v1800, %v1804
      %v1806 = vmul.f32 %v1661, %v1805
      %vm1807 = vcmp.eq.f32.partialorder %v1661, inf
      %v1808 = vsel %vm1807, %v1661, %v1806
      %vm1809 = vcmp.eq.f32.partialorder %v1661, 0.0
      %v1810 = vand.u32 %v1661, 2147483648
      %v1811 = vsel %vm1809, %v1810, %v1808
      %v1812 = vrsqrt.pop %v1663
      %v1813 = vmul.f32 %v1812, %v1663
      %v1814 = vmul.f32 %v1813, %v1812
      %v1815 = vmul.f32 0.5, %v1814
      %v1816 = vsub.f32 1.5, %v1815
      %v1817 = vmul.f32 %v1812, %v1816
      %v1818 = vmul.f32 %v1663, %v1817
      %vm1819 = vcmp.eq.f32.partialorder %v1663, inf
      %v1820 = vsel %vm1819, %v1663, %v1818
      %vm1821 = vcmp.eq.f32.partialorder %v1663, 0.0
      %v1822 = vand.u32 %v1663, 2147483648
      %v1823 = vsel %vm1821, %v1822, %v1820
      %v1824 = vrsqrt.pop %v1665
      %v1825 = vmul.f32 %v1824, %v1665
      %v1826 = vmul.f32 %v1825, %v1824
      %v1827 = vmul.f32 0.5, %v1826
      %v1828 = vsub.f32 1.5, %v1827
      %v1829 = vmul.f32 %v1824, %v1828
      %v1830 = vmul.f32 %v1665, %v1829
      %vm1831 = vcmp.eq.f32.partialorder %v1665, inf
      %v1832 = vsel %vm1831, %v1665, %v1830
      %vm1833 = vcmp.eq.f32.partialorder %v1665, 0.0
      %v1834 = vand.u32 %v1665, 2147483648
      %v1835 = vsel %vm1833, %v1834, %v1832
      %v1836 = vrsqrt.pop %v1667
      %v1837 = vmul.f32 %v1836, %v1667
      %v1838 = vmul.f32 %v1837, %v1836
      %v1839 = vmul.f32 0.5, %v1838
      %v1840 = vsub.f32 1.5, %v1839
      %v1841 = vmul.f32 %v1836, %v1840
      %v1842 = vmul.f32 %v1667, %v1841
      %vm1843 = vcmp.eq.f32.partialorder %v1667, inf
      %v1844 = vsel %vm1843, %v1667, %v1842
      %vm1845 = vcmp.eq.f32.partialorder %v1667, 0.0
      %v1846 = vand.u32 %v1667, 2147483648
      %v1847 = vsel %vm1845, %v1846, %v1844
      %v1848 = vrsqrt.pop %v1669
      %v1849 = vmul.f32 %v1848, %v1669
      %v1850 = vmul.f32 %v1849, %v1848
      %v1851 = vmul.f32 0.5, %v1850
      %v1852 = vsub.f32 1.5, %v1851
      %v1853 = vmul.f32 %v1848, %v1852
      %v1854 = vmul.f32 %v1669, %v1853
      %vm1855 = vcmp.eq.f32.partialorder %v1669, inf
      %v1856 = vsel %vm1855, %v1669, %v1854
      %vm1857 = vcmp.eq.f32.partialorder %v1669, 0.0
      %v1858 = vand.u32 %v1669, 2147483648
      %v1859 = vsel %vm1857, %v1858, %v1856
      %v1860 = vrsqrt.pop %v1671
      %v1861 = vmul.f32 %v1860, %v1671
      %v1862 = vmul.f32 %v1861, %v1860
      %v1863 = vmul.f32 0.5, %v1862
      %v1864 = vsub.f32 1.5, %v1863
      %v1865 = vmul.f32 %v1860, %v1864
      %v1866 = vmul.f32 %v1671, %v1865
      %vm1867 = vcmp.eq.f32.partialorder %v1671, inf
      %v1868 = vsel %vm1867, %v1671, %v1866
      %vm1869 = vcmp.eq.f32.partialorder %v1671, 0.0
      %v1870 = vand.u32 %v1671, 2147483648
      %v1871 = vsel %vm1869, %v1870, %v1868
      %v1872 = vrsqrt.pop %v1673
      %v1873 = vmul.f32 %v1872, %v1673
      %v1874 = vmul.f32 %v1873, %v1872
      %v1875 = vmul.f32 0.5, %v1874
      %v1876 = vsub.f32 1.5, %v1875
      %v1877 = vmul.f32 %v1872, %v1876
      %v1878 = vmul.f32 %v1673, %v1877
      %vm1879 = vcmp.eq.f32.partialorder %v1673, inf
      %v1880 = vsel %vm1879, %v1673, %v1878
      %vm1881 = vcmp.eq.f32.partialorder %v1673, 0.0
      %v1882 = vand.u32 %v1673, 2147483648
      %v1883 = vsel %vm1881, %v1882, %v1880
      %v1884 = vrsqrt.pop %v1675
      %v1885 = vmul.f32 %v1884, %v1675
      %v1886 = vmul.f32 %v1885, %v1884
      %v1887 = vmul.f32 0.5, %v1886
      %v1888 = vsub.f32 1.5, %v1887
      %v1889 = vmul.f32 %v1884, %v1888
      %v1890 = vmul.f32 %v1675, %v1889
      %vm1891 = vcmp.eq.f32.partialorder %v1675, inf
      %v1892 = vsel %vm1891, %v1675, %v1890
      %vm1893 = vcmp.eq.f32.partialorder %v1675, 0.0
      %v1894 = vand.u32 %v1675, 2147483648
      %v1895 = vsel %vm1893, %v1894, %v1892
      %v1896 = vrsqrt.pop %v1677
      %v1897 = vmul.f32 %v1896, %v1677
      %v1898 = vmul.f32 %v1897, %v1896
      %v1899 = vmul.f32 0.5, %v1898
      %v1900 = vsub.f32 1.5, %v1899
      %v1901 = vmul.f32 %v1896, %v1900
      %v1902 = vmul.f32 %v1677, %v1901
      %vm1903 = vcmp.eq.f32.partialorder %v1677, inf
      %v1904 = vsel %vm1903, %v1677, %v1902
      %vm1905 = vcmp.eq.f32.partialorder %v1677, 0.0
      %v1906 = vand.u32 %v1677, 2147483648
      %v1907 = vsel %vm1905, %v1906, %v1904
      %v1908 = vrsqrt.pop %v1679
      %v1909 = vmul.f32 %v1908, %v1679
      %v1910 = vmul.f32 %v1909, %v1908
      %v1911 = vmul.f32 0.5, %v1910
      %v1912 = vsub.f32 1.5, %v1911
      %v1913 = vmul.f32 %v1908, %v1912
      %v1914 = vmul.f32 %v1679, %v1913
      %vm1915 = vcmp.eq.f32.partialorder %v1679, inf
      %v1916 = vsel %vm1915, %v1679, %v1914
      %vm1917 = vcmp.eq.f32.partialorder %v1679, 0.0
      %v1918 = vand.u32 %v1679, 2147483648
      %v1919 = vsel %vm1917, %v1918, %v1916
      %v1920 = vrsqrt.pop %v1681
      %v1921 = vmul.f32 %v1920, %v1681
      %v1922 = vmul.f32 %v1921, %v1920
      %v1923 = vmul.f32 0.5, %v1922
      %v1924 = vsub.f32 1.5, %v1923
      %v1925 = vmul.f32 %v1920, %v1924
      %v1926 = vmul.f32 %v1681, %v1925
      %vm1927 = vcmp.eq.f32.partialorder %v1681, inf
      %v1928 = vsel %vm1927, %v1681, %v1926
      %vm1929 = vcmp.eq.f32.partialorder %v1681, 0.0
      %v1930 = vand.u32 %v1681, 2147483648
      %v1931 = vsel %vm1929, %v1930, %v1928
      %v1932 = vrsqrt.pop %v1683
      %v1933 = vmul.f32 %v1932, %v1683
      %v1934 = vmul.f32 %v1933, %v1932
      %v1935 = vmul.f32 0.5, %v1934
      %v1936 = vsub.f32 1.5, %v1935
      %v1937 = vmul.f32 %v1932, %v1936
      %v1938 = vmul.f32 %v1683, %v1937
      %vm1939 = vcmp.eq.f32.partialorder %v1683, inf
      %v1940 = vsel %vm1939, %v1683, %v1938
      %vm1941 = vcmp.eq.f32.partialorder %v1683, 0.0
      %v1942 = vand.u32 %v1683, 2147483648
      %v1943 = vsel %vm1941, %v1942, %v1940
      %v1944 = vrsqrt.pop %v1685
      %v1945 = vmul.f32 %v1944, %v1685
      %v1946 = vmul.f32 %v1945, %v1944
      %v1947 = vmul.f32 0.5, %v1946
      %v1948 = vsub.f32 1.5, %v1947
      %v1949 = vmul.f32 %v1944, %v1948
      %v1950 = vmul.f32 %v1685, %v1949
      %vm1951 = vcmp.eq.f32.partialorder %v1685, inf
      %v1952 = vsel %vm1951, %v1685, %v1950
      %vm1953 = vcmp.eq.f32.partialorder %v1685, 0.0
      %v1954 = vand.u32 %v1685, 2147483648
      %v1955 = vsel %vm1953, %v1954, %v1952
      %v1956 = vrsqrt.pop %v1687
      %v1957 = vmul.f32 %v1956, %v1687
      %v1958 = vmul.f32 %v1957, %v1956
      %v1959 = vmul.f32 0.5, %v1958
      %v1960 = vsub.f32 1.5, %v1959
      %v1961 = vmul.f32 %v1956, %v1960
      %v1962 = vmul.f32 %v1687, %v1961
      %vm1963 = vcmp.eq.f32.partialorder %v1687, inf
      %v1964 = vsel %vm1963, %v1687, %v1962
      %vm1965 = vcmp.eq.f32.partialorder %v1687, 0.0
      %v1966 = vand.u32 %v1687, 2147483648
      %v1967 = vsel %vm1965, %v1966, %v1964
      %v1968 = vrsqrt.pop %v1689
      %v1969 = vmul.f32 %v1968, %v1689
      %v1970 = vmul.f32 %v1969, %v1968
      %v1971 = vmul.f32 0.5, %v1970
      %v1972 = vsub.f32 1.5, %v1971
      %v1973 = vmul.f32 %v1968, %v1972
      %v1974 = vmul.f32 %v1689, %v1973
      %vm1975 = vcmp.eq.f32.partialorder %v1689, inf
      %v1976 = vsel %vm1975, %v1689, %v1974
      %vm1977 = vcmp.eq.f32.partialorder %v1689, 0.0
      %v1978 = vand.u32 %v1689, 2147483648
      %v1979 = vsel %vm1977, %v1978, %v1976
      %v1980 = vrsqrt.pop %v1691
      %v1981 = vmul.f32 %v1980, %v1691
      %v1982 = vmul.f32 %v1981, %v1980
      %v1983 = vmul.f32 0.5, %v1982
      %v1984 = vsub.f32 1.5, %v1983
      %v1985 = vmul.f32 %v1980, %v1984
      %v1986 = vmul.f32 %v1691, %v1985
      %vm1987 = vcmp.eq.f32.partialorder %v1691, inf
      %v1988 = vsel %vm1987, %v1691, %v1986
      %vm1989 = vcmp.eq.f32.partialorder %v1691, 0.0
      %v1990 = vand.u32 %v1691, 2147483648
      %v1991 = vsel %vm1989, %v1990, %v1988
      %v1992 = vrsqrt.pop %v1693
      %v1993 = vmul.f32 %v1992, %v1693
      %v1994 = vmul.f32 %v1993, %v1992
      %v1995 = vmul.f32 0.5, %v1994
      %v1996 = vsub.f32 1.5, %v1995
      %v1997 = vmul.f32 %v1992, %v1996
      %v1998 = vmul.f32 %v1693, %v1997
      %vm1999 = vcmp.eq.f32.partialorder %v1693, inf
      %v2000 = vsel %vm1999, %v1693, %v1998
      %vm2001 = vcmp.eq.f32.partialorder %v1693, 0.0
      %v2002 = vand.u32 %v1693, 2147483648
      %v2003 = vsel %vm2001, %v2002, %v2000
      %v2004 = vrsqrt.pop %v1695
      %v2005 = vmul.f32 %v2004, %v1695
      %v2006 = vmul.f32 %v2005, %v2004
      %v2007 = vmul.f32 0.5, %v2006
      %v2008 = vsub.f32 1.5, %v2007
      %v2009 = vmul.f32 %v2004, %v2008
      %v2010 = vmul.f32 %v1695, %v2009
      %vm2011 = vcmp.eq.f32.partialorder %v1695, inf
      %v2012 = vsel %vm2011, %v1695, %v2010
      %vm2013 = vcmp.eq.f32.partialorder %v1695, 0.0
      %v2014 = vand.u32 %v1695, 2147483648
      %v2015 = vsel %vm2013, %v2014, %v2012
      %v2016 = vrsqrt.pop %v1697
      %v2017 = vmul.f32 %v2016, %v1697
      %v2018 = vmul.f32 %v2017, %v2016
      %v2019 = vmul.f32 0.5, %v2018
      %v2020 = vsub.f32 1.5, %v2019
      %v2021 = vmul.f32 %v2016, %v2020
      %v2022 = vmul.f32 %v1697, %v2021
      %vm2023 = vcmp.eq.f32.partialorder %v1697, inf
      %v2024 = vsel %vm2023, %v1697, %v2022
      %vm2025 = vcmp.eq.f32.partialorder %v1697, 0.0
      %v2026 = vand.u32 %v1697, 2147483648
      %v2027 = vsel %vm2025, %v2026, %v2024
      %v2028 = vrsqrt.pop %v1699
      %v2029 = vmul.f32 %v2028, %v1699
      %v2030 = vmul.f32 %v2029, %v2028
      %v2031 = vmul.f32 0.5, %v2030
      %v2032 = vsub.f32 1.5, %v2031
      %v2033 = vmul.f32 %v2028, %v2032
      %v2034 = vmul.f32 %v1699, %v2033
      %vm2035 = vcmp.eq.f32.partialorder %v1699, inf
      %v2036 = vsel %vm2035, %v1699, %v2034
      %vm2037 = vcmp.eq.f32.partialorder %v1699, 0.0
      %v2038 = vand.u32 %v1699, 2147483648
      %v2039 = vsel %vm2037, %v2038, %v2036
      %v2040 = vrsqrt.pop %v1701
      %v2041 = vmul.f32 %v2040, %v1701
      %v2042 = vmul.f32 %v2041, %v2040
      %v2043 = vmul.f32 0.5, %v2042
      %v2044 = vsub.f32 1.5, %v2043
      %v2045 = vmul.f32 %v2040, %v2044
      %v2046 = vmul.f32 %v1701, %v2045
      %vm2047 = vcmp.eq.f32.partialorder %v1701, inf
      %v2048 = vsel %vm2047, %v1701, %v2046
      %vm2049 = vcmp.eq.f32.partialorder %v1701, 0.0
      %v2050 = vand.u32 %v1701, 2147483648
      %v2051 = vsel %vm2049, %v2050, %v2048
      %v2052 = vrsqrt.pop %v1703
      %v2053 = vmul.f32 %v2052, %v1703
      %v2054 = vmul.f32 %v2053, %v2052
      %v2055 = vmul.f32 0.5, %v2054
      %v2056 = vsub.f32 1.5, %v2055
      %v2057 = vmul.f32 %v2052, %v2056
      %v2058 = vmul.f32 %v1703, %v2057
      %vm2059 = vcmp.eq.f32.partialorder %v1703, inf
      %v2060 = vsel %vm2059, %v1703, %v2058
      %vm2061 = vcmp.eq.f32.partialorder %v1703, 0.0
      %v2062 = vand.u32 %v1703, 2147483648
      %v2063 = vsel %vm2061, %v2062, %v2060
      %v2064 = vrsqrt.pop %v1705
      %v2065 = vmul.f32 %v2064, %v1705
      %v2066 = vmul.f32 %v2065, %v2064
      %v2067 = vmul.f32 0.5, %v2066
      %v2068 = vsub.f32 1.5, %v2067
      %v2069 = vmul.f32 %v2064, %v2068
      %v2070 = vmul.f32 %v1705, %v2069
      %vm2071 = vcmp.eq.f32.partialorder %v1705, inf
      %v2072 = vsel %vm2071, %v1705, %v2070
      %vm2073 = vcmp.eq.f32.partialorder %v1705, 0.0
      %v2074 = vand.u32 %v1705, 2147483648
      %v2075 = vsel %vm2073, %v2074, %v2072
      %v2076 = vrsqrt.pop %v1707
      %v2077 = vmul.f32 %v2076, %v1707
      %v2078 = vmul.f32 %v2077, %v2076
      %v2079 = vmul.f32 0.5, %v2078
      %v2080 = vsub.f32 1.5, %v2079
      %v2081 = vmul.f32 %v2076, %v2080
      %v2082 = vmul.f32 %v1707, %v2081
      %vm2083 = vcmp.eq.f32.partialorder %v1707, inf
      %v2084 = vsel %vm2083, %v1707, %v2082
      %vm2085 = vcmp.eq.f32.partialorder %v1707, 0.0
      %v2086 = vand.u32 %v1707, 2147483648
      %v2087 = vsel %vm2085, %v2086, %v2084
      %v2088 = vrsqrt.pop %v1709
      %v2089 = vmul.f32 %v2088, %v1709
      %v2090 = vmul.f32 %v2089, %v2088
      %v2091 = vmul.f32 0.5, %v2090
      %v2092 = vsub.f32 1.5, %v2091
      %v2093 = vmul.f32 %v2088, %v2092
      %v2094 = vmul.f32 %v1709, %v2093
      %vm2095 = vcmp.eq.f32.partialorder %v1709, inf
      %v2096 = vsel %vm2095, %v1709, %v2094
      %vm2097 = vcmp.eq.f32.partialorder %v1709, 0.0
      %v2098 = vand.u32 %v1709, 2147483648
      %v2099 = vsel %vm2097, %v2098, %v2096
      %v2100 = vrsqrt.pop %v1711
      %v2101 = vmul.f32 %v2100, %v1711
      %v2102 = vmul.f32 %v2101, %v2100
      %v2103 = vmul.f32 0.5, %v2102
      %v2104 = vsub.f32 1.5, %v2103
      %v2105 = vmul.f32 %v2100, %v2104
      %v2106 = vmul.f32 %v1711, %v2105
      %vm2107 = vcmp.eq.f32.partialorder %v1711, inf
      %v2108 = vsel %vm2107, %v1711, %v2106
      %vm2109 = vcmp.eq.f32.partialorder %v1711, 0.0
      %v2110 = vand.u32 %v1711, 2147483648
      %v2111 = vsel %vm2109, %v2110, %v2108
      %v2112 = vrsqrt.pop %v1713
      %v2113 = vmul.f32 %v2112, %v1713
      %v2114 = vmul.f32 %v2113, %v2112
      %v2115 = vmul.f32 0.5, %v2114
      %v2116 = vsub.f32 1.5, %v2115
      %v2117 = vmul.f32 %v2112, %v2116
      %v2118 = vmul.f32 %v1713, %v2117
      %vm2119 = vcmp.eq.f32.partialorder %v1713, inf
      %v2120 = vsel %vm2119, %v1713, %v2118
      %vm2121 = vcmp.eq.f32.partialorder %v1713, 0.0
      %v2122 = vand.u32 %v1713, 2147483648
      %v2123 = vsel %vm2121, %v2122, %v2120
      %v2124 = vrsqrt.pop %v1715
      %v2125 = vmul.f32 %v2124, %v1715
      %v2126 = vmul.f32 %v2125, %v2124
      %v2127 = vmul.f32 0.5, %v2126
      %v2128 = vsub.f32 1.5, %v2127
      %v2129 = vmul.f32 %v2124, %v2128
      %v2130 = vmul.f32 %v1715, %v2129
      %vm2131 = vcmp.eq.f32.partialorder %v1715, inf
      %v2132 = vsel %vm2131, %v1715, %v2130
      %vm2133 = vcmp.eq.f32.partialorder %v1715, 0.0
      %v2134 = vand.u32 %v1715, 2147483648
      %v2135 = vsel %vm2133, %v2134, %v2132
      %v2136 = vrsqrt.pop %v1717
      %v2137 = vmul.f32 %v2136, %v1717
      %v2138 = vmul.f32 %v2137, %v2136
      %v2139 = vmul.f32 0.5, %v2138
      %v2140 = vsub.f32 1.5, %v2139
      %v2141 = vmul.f32 %v2136, %v2140
      %v2142 = vmul.f32 %v1717, %v2141
      %vm2143 = vcmp.eq.f32.partialorder %v1717, inf
      %v2144 = vsel %vm2143, %v1717, %v2142
      %vm2145 = vcmp.eq.f32.partialorder %v1717, 0.0
      %v2146 = vand.u32 %v1717, 2147483648
      %v2147 = vsel %vm2145, %v2146, %v2144
      %v2148 = vrsqrt.pop %v1719
      %v2149 = vmul.f32 %v2148, %v1719
      %v2150 = vmul.f32 %v2149, %v2148
      %v2151 = vmul.f32 0.5, %v2150
      %v2152 = vsub.f32 1.5, %v2151
      %v2153 = vmul.f32 %v2148, %v2152
      %v2154 = vmul.f32 %v1719, %v2153
      %vm2155 = vcmp.eq.f32.partialorder %v1719, inf
      %v2156 = vsel %vm2155, %v1719, %v2154
      %vm2157 = vcmp.eq.f32.partialorder %v1719, 0.0
      %v2158 = vand.u32 %v1719, 2147483648
      %v2159 = vsel %vm2157, %v2158, %v2156
      %v2160 = vrsqrt.pop %v1721
      %v2161 = vmul.f32 %v2160, %v1721
      %v2162 = vmul.f32 %v2161, %v2160
      %v2163 = vmul.f32 0.5, %v2162
      %v2164 = vsub.f32 1.5, %v2163
      %v2165 = vmul.f32 %v2160, %v2164
      %v2166 = vmul.f32 %v1721, %v2165
      %vm2167 = vcmp.eq.f32.partialorder %v1721, inf
      %v2168 = vsel %vm2167, %v1721, %v2166
      %vm2169 = vcmp.eq.f32.partialorder %v1721, 0.0
      %v2170 = vand.u32 %v1721, 2147483648
      %v2171 = vsel %vm2169, %v2170, %v2168
      %v2172 = vrsqrt.pop %v1723
      %v2173 = vmul.f32 %v2172, %v1723
      %v2174 = vmul.f32 %v2173, %v2172
      %v2175 = vmul.f32 0.5, %v2174
      %v2176 = vsub.f32 1.5, %v2175
      %v2177 = vmul.f32 %v2172, %v2176
      %v2178 = vmul.f32 %v1723, %v2177
      %vm2179 = vcmp.eq.f32.partialorder %v1723, inf
      %v2180 = vsel %vm2179, %v1723, %v2178
      %vm2181 = vcmp.eq.f32.partialorder %v1723, 0.0
      %v2182 = vand.u32 %v1723, 2147483648
      %v2183 = vsel %vm2181, %v2182, %v2180
      %v2184 = vrsqrt.pop %v1725
      %v2185 = vmul.f32 %v2184, %v1725
      %v2186 = vmul.f32 %v2185, %v2184
      %v2187 = vmul.f32 0.5, %v2186
      %v2188 = vsub.f32 1.5, %v2187
      %v2189 = vmul.f32 %v2184, %v2188
      %v2190 = vmul.f32 %v1725, %v2189
      %vm2191 = vcmp.eq.f32.partialorder %v1725, inf
      %v2192 = vsel %vm2191, %v1725, %v2190
      %vm2193 = vcmp.eq.f32.partialorder %v1725, 0.0
      %v2194 = vand.u32 %v1725, 2147483648
      %v2195 = vsel %vm2193, %v2194, %v2192
      %v2196 = vrsqrt.pop %v1727
      %v2197 = vmul.f32 %v2196, %v1727
      %v2198 = vmul.f32 %v2197, %v2196
      %v2199 = vmul.f32 0.5, %v2198
      %v2200 = vsub.f32 1.5, %v2199
      %v2201 = vmul.f32 %v2196, %v2200
      %v2202 = vmul.f32 %v1727, %v2201
      %vm2203 = vcmp.eq.f32.partialorder %v1727, inf
      %v2204 = vsel %vm2203, %v1727, %v2202
      %vm2205 = vcmp.eq.f32.partialorder %v1727, 0.0
      %v2206 = vand.u32 %v1727, 2147483648
      %v2207 = vsel %vm2205, %v2206, %v2204
      %v2208 = vrsqrt.pop %v1729
      %v2209 = vmul.f32 %v2208, %v1729
      %v2210 = vmul.f32 %v2209, %v2208
      %v2211 = vmul.f32 0.5, %v2210
      %v2212 = vsub.f32 1.5, %v2211
      %v2213 = vmul.f32 %v2208, %v2212
      %v2214 = vmul.f32 %v1729, %v2213
      %vm2215 = vcmp.eq.f32.partialorder %v1729, inf
      %v2216 = vsel %vm2215, %v1729, %v2214
      %vm2217 = vcmp.eq.f32.partialorder %v1729, 0.0
      %v2218 = vand.u32 %v1729, 2147483648
      %v2219 = vsel %vm2217, %v2218, %v2216
      %v2220 = vrsqrt.pop %v1731
      %v2221 = vmul.f32 %v2220, %v1731
      %v2222 = vmul.f32 %v2221, %v2220
      %v2223 = vmul.f32 0.5, %v2222
      %v2224 = vsub.f32 1.5, %v2223
      %v2225 = vmul.f32 %v2220, %v2224
      %v2226 = vmul.f32 %v1731, %v2225
      %vm2227 = vcmp.eq.f32.partialorder %v1731, inf
      %v2228 = vsel %vm2227, %v1731, %v2226
      %vm2229 = vcmp.eq.f32.partialorder %v1731, 0.0
      %v2230 = vand.u32 %v1731, 2147483648
      %v2231 = vsel %vm2229, %v2230, %v2228
      %v2232 = vrsqrt.pop %v1733
      %v2233 = vmul.f32 %v2232, %v1733
      %v2234 = vmul.f32 %v2233, %v2232
      %v2235 = vmul.f32 0.5, %v2234
      %v2236 = vsub.f32 1.5, %v2235
      %v2237 = vmul.f32 %v2232, %v2236
      %v2238 = vmul.f32 %v1733, %v2237
      %vm2239 = vcmp.eq.f32.partialorder %v1733, inf
      %v2240 = vsel %vm2239, %v1733, %v2238
      %vm2241 = vcmp.eq.f32.partialorder %v1733, 0.0
      %v2242 = vand.u32 %v1733, 2147483648
      %v2243 = vsel %vm2241, %v2242, %v2240
      %v2244 = vrsqrt.pop %v1735
      %v2245 = vmul.f32 %v2244, %v1735
      %v2246 = vmul.f32 %v2245, %v2244
      %v2247 = vmul.f32 0.5, %v2246
      %v2248 = vsub.f32 1.5, %v2247
      %v2249 = vmul.f32 %v2244, %v2248
      %v2250 = vmul.f32 %v1735, %v2249
      %vm2251 = vcmp.eq.f32.partialorder %v1735, inf
      %v2252 = vsel %vm2251, %v1735, %v2250
      %vm2253 = vcmp.eq.f32.partialorder %v1735, 0.0
      %v2254 = vand.u32 %v1735, 2147483648
      %v2255 = vsel %vm2253, %v2254, %v2252
      %v2256 = vrsqrt.pop %v1737
      %v2257 = vmul.f32 %v2256, %v1737
      %v2258 = vmul.f32 %v2257, %v2256
      %v2259 = vmul.f32 0.5, %v2258
      %v2260 = vsub.f32 1.5, %v2259
      %v2261 = vmul.f32 %v2256, %v2260
      %v2262 = vmul.f32 %v1737, %v2261
      %vm2263 = vcmp.eq.f32.partialorder %v1737, inf
      %v2264 = vsel %vm2263, %v1737, %v2262
      %vm2265 = vcmp.eq.f32.partialorder %v1737, 0.0
      %v2266 = vand.u32 %v1737, 2147483648
      %v2267 = vsel %vm2265, %v2266, %v2264
      %v2268 = vrsqrt.pop %v1739
      %v2269 = vmul.f32 %v2268, %v1739
      %v2270 = vmul.f32 %v2269, %v2268
      %v2271 = vmul.f32 0.5, %v2270
      %v2272 = vsub.f32 1.5, %v2271
      %v2273 = vmul.f32 %v2268, %v2272
      %v2274 = vmul.f32 %v1739, %v2273
      %vm2275 = vcmp.eq.f32.partialorder %v1739, inf
      %v2276 = vsel %vm2275, %v1739, %v2274
      %vm2277 = vcmp.eq.f32.partialorder %v1739, 0.0
      %v2278 = vand.u32 %v1739, 2147483648
      %v2279 = vsel %vm2277, %v2278, %v2276
      %v2280 = vadd.f32 %v1751, %v1763
      %v2281 = vadd.f32 %v2280, %v1775
      %v2282 = vadd.f32 %v2281, %v1787
      %v2283 = vadd.f32 %v2282, %v1799
      %v2284 = vadd.f32 %v2283, %v1811
      %v2285 = vadd.f32 %v2284, %v1823
      %v2286 = vadd.f32 %v2285, %v1835
      %v2287 = vadd.f32 %v2286, %v1847
      %v2288 = vadd.f32 %v2287, %v1859
      %v2289 = vadd.f32 %v2288, %v1871
      %v2290 = vadd.f32 %v2289, %v1883
      %v2291 = vadd.f32 %v2290, %v1895
      %v2292 = vadd.f32 %v2291, %v1907
      %v2293 = vadd.f32 %v2292, %v1919
      %v2294 = vadd.f32 %v2293, %v1931
      %v2295 = vadd.f32 %v2294, %v1943
      %v2296 = vadd.f32 %v2295, %v1955
      %v2297 = vadd.f32 %v2296, %v1967
      %v2298 = vadd.f32 %v2297, %v1979
      %v2299 = vadd.f32 %v2298, %v1991
      %v2300 = vadd.f32 %v2299, %v2003
      %v2301 = vadd.f32 %v2300, %v2015
      %v2302 = vadd.f32 %v2301, %v2027
      %v2303 = vadd.f32 %v2302, %v2039
      %v2304 = vadd.f32 %v2303, %v2051
      %v2305 = vadd.f32 %v2304, %v2063
      %v2306 = vadd.f32 %v2305, %v2075
      %v2307 = vadd.f32 %v2306, %v2087
      %v2308 = vadd.f32 %v2307, %v2099
      %v2309 = vadd.f32 %v2308, %v2111
      %v2310 = vadd.f32 %v2309, %v2123
      %v2311 = vadd.f32 %v2310, %v2135
      %v2312 = vadd.f32 %v2311, %v2147
      %v2313 = vadd.f32 %v2312, %v2159
      %v2314 = vadd.f32 %v2313, %v2171
      %v2315 = vadd.f32 %v2314, %v2183
      %v2316 = vadd.f32 %v2315, %v2195
      %v2317 = vadd.f32 %v2316, %v2207
      %v2318 = vadd.f32 %v2317, %v2219
      %v2319 = vadd.f32 %v2318, %v2231
      %v2320 = vadd.f32 %v2319, %v2243
      %v2321 = vadd.f32 %v2320, %v2255
      %v2322 = vadd.f32 %v2321, %v2267
      %v2323 = vadd.f32 %v2322, %v2279
      %v2324 = vrot.slane %v2323, 4
      %v2325 = vadd.f32 %v2323, %v2324
      %v2326 = vrot.slane %v2325, 2
      %v2327 = vadd.f32 %v2325, %v2326
      %v2328 = vrot.slane %v2327, 1
      %v2329 = vadd.f32 %v2327, %v2328
      %vm2330 = vcmask 0
      %2331 = vst.msk [vmem:[%s156] sm:$0x1] %vm2330, %v2329
      %p2332 = scmp.lt.s32.totalorder %s13, 1
      %s2333 = scalar_select %p2332, %s13, 1
      %s2334 = scalar_lea.vmem %s2, %s2333
      // Predicated region
      $region29: #{tpu_custom_call.1} parent=27 // pred_check
        %p2335 = pneg %p83
      $region30: #{tpu_custom_call.1} parent=27 // pred_check_branch
        %2337 = sbr.rel (%p2335) target = $region32
      $region31: #{tpu_custom_call.1} parent=27 // pred_region
        _
      $region32: #{tpu_custom_call.1} parent=27 // pred_fallthru
        _
    $region28: #{tpu_custom_call.1} parent=5 // pred_fallthru
      _
    %p2338 = scmp.le.s32.totalorder 2, %s8
    // Predicated region
    $region33: #{tpu_custom_call.1} parent=5 // pred_check
      %p2339 = pneg %p2338
    $region34: #{tpu_custom_call.1} parent=5 // pred_check_branch
      %2341 = sbr.rel (%p2339) target = $region36
    $region35: #{tpu_custom_call.1} parent=5 // pred_region
      %s2342 = ssub.s32 %s8, 2
      // Predicated region
      $region37: #{tpu_custom_call.1} parent=35 // pred_check
        %p2343 = pneg %p89
      $region38: #{tpu_custom_call.1} parent=35 // pred_check_branch
        %2345 = sbr.rel (%p2343) target = $region40
      $region39: #{tpu_custom_call.1} parent=35 // pred_region
        %p2346 = scmp.lt.s32.totalorder %s14, 1
        %s2347 = scalar_select %p2346, %s14, 1
        %s2348 = scalar_lea.vmem %s2, %s2347
      $region40: #{tpu_custom_call.1} parent=35 // pred_fallthru
        _
    $region36: #{tpu_custom_call.1} parent=5 // pred_fallthru
      _
  $region6: #{tpu_custom_call.1} parent=0 // loop_footer
    %s12 = sadd.s32 1, %s8
  $region7: #{tpu_custom_call.1} parent=0 // loop_footer_branch
    %7 = sbr.rel target = $region3
  $region8: #{tpu_custom_call.1} parent=0 // loop_exit
    _

</llo_original>
